<compile_context>
chip_gen: v7x
topology: tpu7x:2x2x1
jax: 0.10.0
libtpu: 0.0.40
codegen_flags: <defaults>
</compile_context>

<pallas_src>
import functools

import jax
import jax.numpy as jnp
from jax.experimental import pallas as pl
from jax.experimental.pallas import tpu as pltpu

# ----------------------- config (small, synthetic) -----------------------
BATCH = 2
SEQ = 8
INTERMEDIATE = 64   # config.intermediate_size
HIDDEN = 32         # config.hidden_size
LN_EPS = 1e-12      # config.layer_norm_eps
LANE = 128          # TPU vreg lane width

# Lane-dense rows per grid step.  2048 rows = 8192 tokens; f32 streams are
# x 4 MiB + residual 2 MiB + out 2 MiB (double-buffered) + ~0.5 MiB residents
# -> fits v5e's 16 MiB default scoped VMEM.  On v6e/v7x pass block_rows=4096
# (and vmem_limit_bytes=32<<20) to halve the remaining per-step overhead.
BLOCK_ROWS = 2048


def _round_up(x, m):
    return ((x + m - 1) // m) * m


def _select_row_tile(mr, block_rows):
    """Rows per grid step.

    * multiple of 8 (sublane tiling) unless it covers the whole array,
    * capped by block_rows (VMEM),
    * >= 2 grid steps for non-trivial problems so both v7x TensorCores get
      work under dimension_semantics=("parallel",).
    """
    if mr <= 16:
        return mr                                   # single full-extent tile
    two_way = _round_up(pl.cdiv(mr, 2), 8)          # guarantees >= 2 steps
    return max(8, min(block_rows, two_way))


def _edgeformer_output_kernel(x_ref, w_ref, seg_ref, par_ref, res_ref, o_ref,
                              *, inv_h, eps, dense_precision):
    """Fused dense + bias + (eval) dropout + residual + LayerNorm, lane-dense.

    x_ref  : (TR, PACK*I)   PACK tokens' activations packed per 128-lane row
    w_ref  : (PACK*I, 128)  block-diagonal kron(I_PACK, W^T), resident
    seg_ref: (128, 128)     0/1 segment-sum matrix (per-token reductions)
    par_ref: (3, 128)       rows = [bias, gamma, beta], each tiled PACK times
    res_ref: (TR, 128)      residual, lane-dense
    o_ref  : (TR, 128)      output, lane-dense (unmasked full-width stores)
    """
    hp = jax.lax.Precision.HIGHEST
    # dense: each 128-lane row holds PACK tokens' (x @ W^T) side by side
    h = jnp.dot(x_ref[...], w_ref[...],
                preferred_element_type=jnp.float32, precision=dense_precision)
    par = par_ref[...]
    h = h + par[0:1, :]                     # + bias (tiled PACK times)
    # dropout: eval-mode identity
    # TODO(synk): training-mode dropout (pltpu.prng_seed / prng_random_bits mask).
    h = h + res_ref[...]                    # + residual
    # per-token LayerNorm: segment reductions over each token's H lanes via MXU.
    # Kept in the numerically safe centered form (two dots); the single
    # stacked-dot E[h^2]-mean^2 variant is faster on v5e but risks cancellation.
    # TODO(synk): v5e micro-opt — per-operand precision (HIGHEST, DEFAULT) on
    # the seg dots (seg is exactly 0/1) to halve MXU passes.
    seg = seg_ref[...]
    mean = jnp.dot(h, seg, preferred_element_type=jnp.float32,
                   precision=hp) * inv_h
    centered = h - mean
    var = jnp.dot(centered * centered, seg, preferred_element_type=jnp.float32,
                  precision=hp) * inv_h
    out = centered * jax.lax.rsqrt(var + eps) * par[1:2, :] + par[2:3, :]
    o_ref[...] = out.astype(o_ref.dtype)


def prepare_edgeformer_output_params(weight, bias, gamma, beta,
                                     *, use_bf16_matmul=False):
    """One-time parameter prep (runs once, outside the hot path).

    weight: PyTorch nn.Linear layout (H, I).
    Returns (packed_w, seg_mat, params) for edgeformer_output().
    """
    H, _ = weight.shape
    assert LANE % H == 0, "lane-packing path assumes hidden_size divides 128"
    pack = LANE // H
    w_t = weight.T                                              # (I, H)
    # block-diagonal weight -> matmul output is already lane-dense
    packed_w = jnp.kron(jnp.eye(pack, dtype=w_t.dtype), w_t)    # (pack*I, 128)
    if use_bf16_matmul:
        packed_w = packed_w.astype(jnp.bfloat16)                # v6e/v7x MXU-native
    # 0/1 segment-sum matrix: S[i, j] = 1 iff lanes i, j belong to same token
    seg_ids = jnp.arange(LANE) // H
    seg_mat = (seg_ids[:, None] == seg_ids[None, :]).astype(jnp.float32)
    # fuse bias / gamma / beta into a single resident (3, 128) array
    params = jnp.stack([jnp.tile(bias, pack),
                        jnp.tile(gamma, pack),
                        jnp.tile(beta, pack)]).astype(jnp.float32)
    return packed_w, seg_mat, params


def edgeformer_output(hidden_states, input_tensor, packed_w, seg_mat, params,
                      *, eps=LN_EPS, block_rows=BLOCK_ROWS,
                      use_bf16_matmul=False, vmem_limit_bytes=None):
    """hidden_states: [B, S, I], input_tensor: [B, S, H] -> [B, S, H]."""
    B, S, I = hidden_states.shape
    H = input_tensor.shape[-1]
    assert LANE % H == 0, "lane-packing path assumes hidden_size divides 128"
    pack = LANE // H
    M = B * S

    x2d = hidden_states.reshape(M, I)
    r2d = input_tensor.reshape(M, H)

    # Lane packing needs M % pack == 0.  Only then do we pad (by < pack
    # tokens).  Row tiling itself never pads: ragged last block is handled by
    # Pallas (rows are independent; invalid tail rows are dropped on store).
    m_packed = pl.cdiv(M, pack) * pack
    if m_packed != M:
        # TODO(synk): route this rare remainder through a tiny second
        # pallas_call instead of a full-array jnp.pad copy.
        x2d = jnp.pad(x2d, ((0, m_packed - M), (0, 0)))
        r2d = jnp.pad(r2d, ((0, m_packed - M), (0, 0)))

    mr = m_packed // pack
    # contiguous row-major reshapes -> free lane-dense 2-D slabs
    x_rows = x2d.reshape(mr, pack * I)
    r_rows = r2d.reshape(mr, LANE)
    if use_bf16_matmul:
        # NOTE: at scale produce the bf16 activations upstream (fused) so this
        # cast doesn't cost its own HBM round trip.
        x_rows = x_rows.astype(jnp.bfloat16)

    tr = _select_row_tile(mr, block_rows)
    n_tiles = pl.cdiv(mr, tr)

    dense_precision = (jax.lax.Precision.DEFAULT if use_bf16_matmul
                       else jax.lax.Precision.HIGHEST)
    kernel = functools.partial(_edgeformer_output_kernel,
                               inv_h=1.0 / H, eps=eps,
                               dense_precision=dense_precision)

    out_dtype = input_tensor.dtype
    x_bytes = x_rows.size * x_rows.dtype.itemsize
    r_bytes = r_rows.size * r_rows.dtype.itemsize
    o_bytes = mr * LANE * jnp.dtype(out_dtype).itemsize
    resident_bytes = (packed_w.size * packed_w.dtype.itemsize
                      + seg_mat.size * seg_mat.dtype.itemsize
                      + params.size * params.dtype.itemsize)
    cost = pl.CostEstimate(
        flops=2 * mr * (pack * I) * LANE      # block-diag dense
        + 4 * mr * LANE * LANE                # two segment-sum dots
        + 10 * mr * LANE,                     # elementwise epilogue
        transcendentals=mr * LANE,            # rsqrt
        bytes_accessed=int(x_bytes + r_bytes + o_bytes + resident_bytes))

    out_rows = pl.pallas_call(
        kernel,
        out_shape=jax.ShapeDtypeStruct((mr, LANE), out_dtype),
        grid_spec=pltpu.PrefetchScalarGridSpec(
            num_scalar_prefetch=0,
            grid=(n_tiles,),
            in_specs=[
                pl.BlockSpec((tr, pack * I), lambda i: (i, 0)),    # x tile
                pl.BlockSpec((pack * I, LANE), lambda i: (0, 0)),  # W (resident)
                pl.BlockSpec((LANE, LANE), lambda i: (0, 0)),      # segment-sum
                pl.BlockSpec((3, LANE), lambda i: (0, 0)),         # bias/gamma/beta
                pl.BlockSpec((tr, LANE), lambda i: (i, 0)),        # residual tile
            ],
            out_specs=pl.BlockSpec((tr, LANE), lambda i: (i, 0)),
        ),
        compiler_params=pltpu.CompilerParams(
            dimension_semantics=("parallel",),
            vmem_limit_bytes=vmem_limit_bytes),
        cost_estimate=cost,
    )(x_rows, packed_w, seg_mat, params, r_rows)

    out2d = out_rows.reshape(m_packed, H)[:M]
    return out2d.reshape(B, S, H)


def reference(hidden_states, input_tensor, weight, bias, gamma, beta, eps=LN_EPS):
    h = jnp.einsum("bsi,hi->bsh", hidden_states, weight,
                   precision=jax.lax.Precision.HIGHEST) + bias
    h = h + input_tensor
    mean = jnp.mean(h, axis=-1, keepdims=True)
    var = jnp.mean((h - mean) ** 2, axis=-1, keepdims=True)
    return (h - mean) * jax.lax.rsqrt(var + eps) * gamma + beta


if __name__ == "__main__":
    key = jax.random.PRNGKey(0)
    k1, k2, k3, k4, k5, k6 = jax.random.split(key, 6)

    # deterministic synthetic parameters (PyTorch nn.Linear layout: [out, in])
    weight = jax.random.normal(k1, (HIDDEN, INTERMEDIATE), jnp.float32) * 0.02
    bias = jax.random.normal(k2, (HIDDEN,), jnp.float32) * 0.02
    gamma = jnp.ones((HIDDEN,), jnp.float32) \
        + 0.1 * jax.random.normal(k3, (HIDDEN,), jnp.float32)
    beta = 0.1 * jax.random.normal(k4, (HIDDEN,), jnp.float32)

    # inputs
    hidden_states = jax.random.normal(k5, (BATCH, SEQ, INTERMEDIATE), jnp.float32)
    input_tensor = jax.random.normal(k6, (BATCH, SEQ, HIDDEN), jnp.float32)

    # reference (matches the PyTorch module's f32 semantics)
    ref = reference(hidden_states, input_tensor, weight, bias, gamma, beta)

    # ---- f32 exact path (default) ----
    packed_w, seg_mat, params = prepare_edgeformer_output_params(
        weight, bias, gamma, beta)
    out = edgeformer_output(hidden_states, input_tensor,
                            packed_w, seg_mat, params)
    out = jax.block_until_ready(out)
    assert out.shape == (BATCH, SEQ, HIDDEN)
    assert jnp.allclose(out, ref, atol=1e-4, rtol=1e-4), "f32 path mismatch"

    # ---- bf16 streaming path (v6e/v7x perf mode; looser tolerance) ----
    packed_w_bf, seg_mat_bf, params_bf = prepare_edgeformer_output_params(
        weight, bias, gamma, beta, use_bf16_matmul=True)
    out_bf = edgeformer_output(hidden_states, input_tensor,
                               packed_w_bf, seg_mat_bf, params_bf,
                               use_bf16_matmul=True)
    out_bf = jax.block_until_ready(out_bf)
    assert jnp.allclose(out_bf, ref, atol=3e-2, rtol=3e-2), "bf16 path mismatch"

    print("KERNEL_OK")
</pallas_src>

<mosaic_0001>
module attributes {stable_mosaic.version = 11 : i64} {
  func.func @_edgeformer_output_kernel(%arg0: i32, %arg1: memref<4x256xf32, #tpu.memory_space<vmem>>, %arg2: memref<256x128xf32, #tpu.memory_space<vmem>>, %arg3: memref<128x128xf32, #tpu.memory_space<vmem>>, %arg4: memref<3x128xf32, #tpu.memory_space<vmem>>, %arg5: memref<4x128xf32, #tpu.memory_space<vmem>>, %arg6: memref<4x128xf32, #tpu.memory_space<vmem>>) attributes {dimension_semantics = [#tpu.dimension_semantics<parallel>], iteration_bounds = array<i64: 1>, scalar_prefetch = 0 : i64, scratch_operands = 0 : i64, tpu.core_type = #tpu.core_type<tc>, window_params = [{transform_indices = @transform_0, window_bounds = array<i64: 4, 256>}, {pipeline_mode = #tpu.pipeline_mode<synchronous>, transform_indices = @transform_1, window_bounds = array<i64: 256, 128>}, {pipeline_mode = #tpu.pipeline_mode<synchronous>, transform_indices = @transform_2, window_bounds = array<i64: 128, 128>}, {pipeline_mode = #tpu.pipeline_mode<synchronous>, transform_indices = @transform_3, window_bounds = array<i64: 3, 128>}, {transform_indices = @transform_4, window_bounds = array<i64: 4, 128>}, {transform_indices = @transform_5, window_bounds = array<i64: 4, 128>}]} {
    %c0 = arith.constant 0 : index
    %c0_0 = arith.constant 0 : index
    %0 = vector.load %arg1[%c0, %c0_0] : memref<4x256xf32, #tpu.memory_space<vmem>>, vector<4x256xf32>
    %c0_1 = arith.constant 0 : index
    %c0_2 = arith.constant 0 : index
    %1 = vector.load %arg2[%c0_1, %c0_2] : memref<256x128xf32, #tpu.memory_space<vmem>>, vector<256x128xf32>
    %cst = arith.constant dense<0.000000e+00> : vector<4x128xf32>
    %2 = tpu.matmul %0, %1, %cst {dimension_numbers = #tpu.dot_dimension_numbers<[1], [0], [0], [1], [0, 0, 1, 1], [], []>, precision = #tpu.contract_precision<fp32>} : vector<4x256xf32>, vector<256x128xf32>, vector<4x128xf32> -> vector<4x128xf32>
    %c0_3 = arith.constant 0 : index
    %c0_4 = arith.constant 0 : index
    %3 = vector.load %arg4[%c0_3, %c0_4] : memref<3x128xf32, #tpu.memory_space<vmem>>, vector<3x128xf32>
    %4 = vector.extract_strided_slice %3 {offsets = [0, 0], sizes = [1, 128], strides = [1, 1]} : vector<3x128xf32> to vector<1x128xf32>
    %5 = vector.broadcast %4 : vector<1x128xf32> to vector<4x128xf32>
    %6 = arith.addf %2, %5 : vector<4x128xf32>
    %c0_5 = arith.constant 0 : index
    %c0_6 = arith.constant 0 : index
    %7 = vector.load %arg5[%c0_5, %c0_6] : memref<4x128xf32, #tpu.memory_space<vmem>>, vector<4x128xf32>
    %8 = arith.addf %6, %7 : vector<4x128xf32>
    %c0_7 = arith.constant 0 : index
    %c0_8 = arith.constant 0 : index
    %9 = vector.load %arg3[%c0_7, %c0_8] : memref<128x128xf32, #tpu.memory_space<vmem>>, vector<128x128xf32>
    %cst_9 = arith.constant dense<0.000000e+00> : vector<4x128xf32>
    %10 = tpu.matmul %8, %9, %cst_9 {dimension_numbers = #tpu.dot_dimension_numbers<[1], [0], [0], [1], [0, 0, 1, 1], [], []>, precision = #tpu.contract_precision<fp32>} : vector<4x128xf32>, vector<128x128xf32>, vector<4x128xf32> -> vector<4x128xf32>
    %cst_10 = arith.constant 3.125000e-02 : f32
    %11 = vector.broadcast %cst_10 : f32 to vector<4x128xf32>
    %12 = arith.mulf %10, %11 : vector<4x128xf32>
    %13 = arith.subf %8, %12 : vector<4x128xf32>
    %14 = arith.mulf %13, %13 : vector<4x128xf32>
    %cst_11 = arith.constant dense<0.000000e+00> : vector<4x128xf32>
    %15 = tpu.matmul %14, %9, %cst_11 {dimension_numbers = #tpu.dot_dimension_numbers<[1], [0], [0], [1], [0, 0, 1, 1], [], []>, precision = #tpu.contract_precision<fp32>} : vector<4x128xf32>, vector<128x128xf32>, vector<4x128xf32> -> vector<4x128xf32>
    %cst_12 = arith.constant 3.125000e-02 : f32
    %16 = vector.broadcast %cst_12 : f32 to vector<4x128xf32>
    %17 = arith.mulf %15, %16 : vector<4x128xf32>
    %cst_13 = arith.constant 9.99999996E-13 : f32
    %18 = vector.broadcast %cst_13 : f32 to vector<4x128xf32>
    %19 = arith.addf %17, %18 : vector<4x128xf32>
    %20 = math.rsqrt %19 : vector<4x128xf32>
    %21 = arith.mulf %13, %20 : vector<4x128xf32>
    %22 = vector.extract_strided_slice %3 {offsets = [1, 0], sizes = [1, 128], strides = [1, 1]} : vector<3x128xf32> to vector<1x128xf32>
    %23 = vector.broadcast %22 : vector<1x128xf32> to vector<4x128xf32>
    %24 = arith.mulf %21, %23 : vector<4x128xf32>
    %25 = vector.extract_strided_slice %3 {offsets = [2, 0], sizes = [1, 128], strides = [1, 1]} : vector<3x128xf32> to vector<1x128xf32>
    %26 = vector.broadcast %25 : vector<1x128xf32> to vector<4x128xf32>
    %27 = arith.addf %24, %26 : vector<4x128xf32>
    %c0_14 = arith.constant 0 : index
    %c0_15 = arith.constant 0 : index
    %28 = vector.load %arg6[%c0_14, %c0_15] : memref<4x128xf32, #tpu.memory_space<vmem>>, vector<4x128xf32>
    tpu.vector_store %arg6[%c0_14, %c0_15], %27 {strides = array<i32>} : memref<4x128xf32, #tpu.memory_space<vmem>>, vector<4x128xf32>,
    return
  }
  func.func @transform_0(%arg0: i32) -> (i32, i32) {
    %c0_i32 = arith.constant 0 : i32
    %c0_i32_0 = arith.constant 0 : i32
    return %arg0, %c0_i32 : i32, i32
  }
  func.func @transform_1(%arg0: i32) -> (i32, i32) {
    %c0_i32 = arith.constant 0 : i32
    %c0_i32_0 = arith.constant 0 : i32
    %c0_i32_1 = arith.constant 0 : i32
    return %c0_i32, %c0_i32_0 : i32, i32
  }
  func.func @transform_2(%arg0: i32) -> (i32, i32) {
    %c0_i32 = arith.constant 0 : i32
    %c0_i32_0 = arith.constant 0 : i32
    %c0_i32_1 = arith.constant 0 : i32
    return %c0_i32, %c0_i32_0 : i32, i32
  }
  func.func @transform_3(%arg0: i32) -> (i32, i32) {
    %c0_i32 = arith.constant 0 : i32
    %c0_i32_0 = arith.constant 0 : i32
    %c0_i32_1 = arith.constant 0 : i32
    return %c0_i32, %c0_i32_0 : i32, i32
  }
  func.func @transform_4(%arg0: i32) -> (i32, i32) {
    %c0_i32 = arith.constant 0 : i32
    %c0_i32_0 = arith.constant 0 : i32
    return %arg0, %c0_i32 : i32, i32
  }
  func.func @transform_5(%arg0: i32) -> (i32, i32) {
    %c0_i32 = arith.constant 0 : i32
    %c0_i32_0 = arith.constant 0 : i32
    return %arg0, %c0_i32 : i32, i32
  }
}

</mosaic_0001>

<llo_original>
// kernel: tpu_custom_call.1
$region0: #{tpu_custom_call.1}
  #allocation0 [shape = 'u32[]', space=smem, size = 0x4, offset = 0x4, fixed_abs, tag = 'smem constant byte address 0x4 - core index']
  #allocation1 [shape = 'u32[144,128]{1,0:T(1,128)}', space=vmem, size = 0x12000, scoped, tag = 'internal scratch']
  %s0 = inlined_call_operand.hbm [shape: f32[4,256], index: 0, kind: input, shape index: {}]
  %s1 = inlined_call_operand.hbm [shape: f32[256,128], index: 1, kind: input, shape index: {}]
  %s2 = inlined_call_operand.hbm [shape: f32[128,128], index: 2, kind: input, shape index: {}]
  %s3 = inlined_call_operand.vmem [shape: f32[3,128], index: 3, kind: input, shape index: {}]
  %s4 = inlined_call_operand.vmem [shape: f32[4,128], index: 4, kind: input, shape index: {}]
  %s5 = inlined_call_operand.hbm [shape: f32[4,128], index: 5, kind: output, shape index: {}]
  %s6 = sld [smem:[#allocation0]]
  $region42: #{tpu_custom_call.1} parent=0
    _
  %s8 = ssub.s32 1, %s6
  %s9 = scalar_select 0, %s8, %s6
  $region1: #{tpu_custom_call.1} parent=0
    #allocation2 [shape = 'u8[4096]{0}', space=vmem, size = 0x1000, scoped, tag = 'input window, operand 0, single buffered']
    #allocation3 [shape = 's32[1]{0}', space=sflag, size = 0x4, scoped, tag = 'scoped memory for tpu_custom_call.1']
    #allocation4 [shape = 's32[1]{0}', space=sflag, size = 0x4, scoped, tag = 'scoped memory for tpu_custom_call.1']
    #allocation5 [shape = 'u8[131072]{0}', space=vmem, size = 0x20000, scoped, tag = 'input window, operand 1, single buffered']
    #allocation6 [shape = 's32[1]{0}', space=sflag, size = 0x4, scoped, tag = 'scoped memory for tpu_custom_call.1']
    #allocation7 [shape = 'u8[65536]{0}', space=vmem, size = 0x10000, scoped, tag = 'input window, operand 2, single buffered']
    #allocation8 [shape = 'u8[2048]{0}', space=vmem, size = 0x800, scoped, tag = 'output window, operand 0, single buffered']
    %10 = vsyncpa [#allocation3], 0
    %11 = vsyncpa [#allocation6], 0
    %12 = vsyncpa [#allocation4], 0
    // Predicated region
    $region2: #{tpu_custom_call.1} parent=1 // pred_check
      _
    $region3: #{tpu_custom_call.1} parent=1 // pred_check_branch
      %14 = sbr.rel (0) target = $region5
    $region4: #{tpu_custom_call.1} parent=1 // pred_region
      %s16 = ssub.s32 128, 128
      %17 = vsyncadd [#allocation3], %s16
      %s19 = sshll.u32 [#allocation2], 4
      %s20 = int_to_ptr.vmem [resolvable:$true] %s19
      %22 = dma.hbm_to_vmem [thread:$0]  %s0, 128, %s20, [#allocation3]
    $region5: #{tpu_custom_call.1} parent=1 // pred_fallthru
      _
    // Predicated region
    $region6: #{tpu_custom_call.1} parent=1 // pred_check
      _
    $region7: #{tpu_custom_call.1} parent=1 // pred_check_branch
      %24 = sbr.rel (0) target = $region9
    $region8: #{tpu_custom_call.1} parent=1 // pred_region
      %s26 = ssub.s32 4096, 4096
      %27 = vsyncadd [#allocation6], %s26
      %s28 = sshll.u32 [#allocation5], 4
      %s29 = int_to_ptr.vmem [resolvable:$true] %s28
      %34 = dma.hbm_to_vmem [thread:$0]  %s1, 4096, %s29, [#allocation6], 128, 128, 8
    $region9: #{tpu_custom_call.1} parent=1 // pred_fallthru
      _
    // Predicated region
    $region10: #{tpu_custom_call.1} parent=1 // pred_check
      _
    $region11: #{tpu_custom_call.1} parent=1 // pred_check_branch
      %36 = sbr.rel (0) target = $region13
    $region12: #{tpu_custom_call.1} parent=1 // pred_region
      %s38 = ssub.s32 2048, 2048
      %39 = vsyncadd [#allocation6], %s38
      %s40 = sshll.u32 [#allocation7], 4
      %s41 = int_to_ptr.vmem [resolvable:$true] %s40
      %46 = dma.hbm_to_vmem [thread:$0]  %s2, 2048, %s41, [#allocation6], 128, 128, 8
    $region13: #{tpu_custom_call.1} parent=1 // pred_fallthru
      _
    // Predicated region
    $region14: #{tpu_custom_call.1} parent=1 // pred_check
      _
    $region15: #{tpu_custom_call.1} parent=1 // pred_check_branch
      %48 = sbr.rel (0) target = $region17
    $region16: #{tpu_custom_call.1} parent=1 // pred_region
      _
    $region17: #{tpu_custom_call.1} parent=1 // pred_fallthru
      _
    // Predicated region
    $region18: #{tpu_custom_call.1} parent=1 // pred_check
      _
    $region19: #{tpu_custom_call.1} parent=1 // pred_check_branch
      %50 = sbr.rel (0) target = $region21
    $region20: #{tpu_custom_call.1} parent=1 // pred_region
      _
    $region21: #{tpu_custom_call.1} parent=1 // pred_fallthru
      _
    // Predicated region
    $region22: #{tpu_custom_call.1} parent=1 // pred_check
      _
    $region23: #{tpu_custom_call.1} parent=1 // pred_check_branch
      %52 = sbr.rel (0) target = $region25
    $region24: #{tpu_custom_call.1} parent=1 // pred_region
      %53 = dma.done [#allocation3], 128
    $region25: #{tpu_custom_call.1} parent=1 // pred_fallthru
      _
    // Predicated region
    $region26: #{tpu_custom_call.1} parent=1 // pred_check
      _
    $region27: #{tpu_custom_call.1} parent=1 // pred_check_branch
      %55 = sbr.rel (0) target = $region29
    $region28: #{tpu_custom_call.1} parent=1 // pred_region
      %56 = dma.done [#allocation6], 4096
    $region29: #{tpu_custom_call.1} parent=1 // pred_fallthru
      _
    // Predicated region
    $region30: #{tpu_custom_call.1} parent=1 // pred_check
      _
    $region31: #{tpu_custom_call.1} parent=1 // pred_check_branch
      %58 = sbr.rel (0) target = $region33
    $region32: #{tpu_custom_call.1} parent=1 // pred_region
      %59 = dma.done [#allocation6], 2048
    $region33: #{tpu_custom_call.1} parent=1 // pred_fallthru
      _
    %v60 = vld [vmem:[#allocation2] sm:$0xff]
    %v61 = vld [vmem:[#allocation5] sm:$0xff]
    %v62 = vld [vmem:[#allocation5 + $0x8] sm:$0xff]
    %v63 = vld [vmem:[#allocation5 + $0x10] sm:$0xff]
    %v64 = vld [vmem:[#allocation5 + $0x18] sm:$0xff]
    %v65 = vld [vmem:[#allocation5 + $0x20] sm:$0xff]
    %v66 = vld [vmem:[#allocation5 + $0x28] sm:$0xff]
    %v67 = vld [vmem:[#allocation5 + $0x30] sm:$0xff]
    %v68 = vld [vmem:[#allocation5 + $0x38] sm:$0xff]
    %v69 = vld [vmem:[#allocation5 + $0x40] sm:$0xff]
    %v70 = vld [vmem:[#allocation5 + $0x48] sm:$0xff]
    %v71 = vld [vmem:[#allocation5 + $0x50] sm:$0xff]
    %v72 = vld [vmem:[#allocation5 + $0x58] sm:$0xff]
    %v73 = vld [vmem:[#allocation5 + $0x60] sm:$0xff]
    %v74 = vld [vmem:[#allocation5 + $0x68] sm:$0xff]
    %v75 = vld [vmem:[#allocation5 + $0x70] sm:$0xff]
    %v76 = vld [vmem:[#allocation5 + $0x78] sm:$0xff]
    %v77 = vld [vmem:[#allocation5 + $0x80] sm:$0xff]
    %v78 = vld [vmem:[#allocation5 + $0x88] sm:$0xff]
    %v79 = vld [vmem:[#allocation5 + $0x90] sm:$0xff]
    %v80 = vld [vmem:[#allocation5 + $0x98] sm:$0xff]
    %v81 = vld [vmem:[#allocation5 + $0xa0] sm:$0xff]
    %v82 = vld [vmem:[#allocation5 + $0xa8] sm:$0xff]
    %v83 = vld [vmem:[#allocation5 + $0xb0] sm:$0xff]
    %v84 = vld [vmem:[#allocation5 + $0xb8] sm:$0xff]
    %v85 = vld [vmem:[#allocation5 + $0xc0] sm:$0xff]
    %v86 = vld [vmem:[#allocation5 + $0xc8] sm:$0xff]
    %v87 = vld [vmem:[#allocation5 + $0xd0] sm:$0xff]
    %v88 = vld [vmem:[#allocation5 + $0xd8] sm:$0xff]
    %v89 = vld [vmem:[#allocation5 + $0xe0] sm:$0xff]
    %v90 = vld [vmem:[#allocation5 + $0xe8] sm:$0xff]
    %v91 = vld [vmem:[#allocation5 + $0xf0] sm:$0xff]
    %v92 = vld [vmem:[#allocation5 + $0xf8] sm:$0xff]
    %v93 = vld [vmem:[%s3] sm:$0x7]
    %v94 = vlaneseq
    %v95 = vshrl.u32 %v94, 7
    %v96 = vsub.s32 0, %v95
    %v97 = vrot.slane %v93, %v96
    %v99 = vcombine.high %v60, %v60
    %101 = vmatprep.subr.mxu0 0.0
    %v102 = vand.u32 %v61, 4294901760
    %103 = vmatpush1.msra.mxu0 %v102
    %104 = vmatprep.subr.mxu0 0.0
    %v105 = vand.u32 %v62, 4294901760
    %106 = vmatpush1.msra.mxu0 %v105
    %107 = vmatprep.subr.mxu0 0.0
    %v108 = vand.u32 %v63, 4294901760
    %109 = vmatpush1.msra.mxu0 %v108
    %110 = vmatprep.subr.mxu0 0.0
    %v111 = vand.u32 %v64, 4294901760
    %112 = vmatpush1.msra.mxu0 %v111
    %113 = vmatprep.subr.mxu0 0.0
    %v114 = vand.u32 %v65, 4294901760
    %115 = vmatpush1.msra.mxu0 %v114
    %116 = vmatprep.subr.mxu0 0.0
    %v117 = vand.u32 %v66, 4294901760
    %118 = vmatpush1.msra.mxu0 %v117
    %119 = vmatprep.subr.mxu0 0.0
    %v120 = vand.u32 %v67, 4294901760
    %121 = vmatpush1.msra.mxu0 %v120
    %122 = vmatprep.subr.mxu0 0.0
    %v123 = vand.u32 %v68, 4294901760
    %124 = vmatpush1.msra.mxu0 %v123
    %125 = vmatprep.subr.mxu0 0.0
    %v126 = vand.u32 %v69, 4294901760
    %127 = vmatpush1.msra.mxu0 %v126
    %128 = vmatprep.subr.mxu0 0.0
    %v129 = vand.u32 %v70, 4294901760
    %130 = vmatpush1.msra.mxu0 %v129
    %131 = vmatprep.subr.mxu0 0.0
    %v132 = vand.u32 %v71, 4294901760
    %133 = vmatpush1.msra.mxu0 %v132
    %134 = vmatprep.subr.mxu0 0.0
    %v135 = vand.u32 %v72, 4294901760
    %136 = vmatpush1.msra.mxu0 %v135
    %137 = vmatprep.subr.mxu0 0.0
    %v138 = vand.u32 %v73, 4294901760
    %139 = vmatpush1.msra.mxu0 %v138
    %140 = vmatprep.subr.mxu0 0.0
    %v141 = vand.u32 %v74, 4294901760
    %142 = vmatpush1.msra.mxu0 %v141
    %143 = vmatprep.subr.mxu0 0.0
    %v144 = vand.u32 %v75, 4294901760
    %145 = vmatpush1.msra.mxu0 %v144
    %146 = vmatprep.subr.mxu0 0.0
    %v147 = vand.u32 %v76, 4294901760
    %148 = vmatpush1.msra.mxu0 %v147
    %149 = vmatprep.subr.mxu0 0.0
    %v150 = vand.u32 %v77, 4294901760
    %151 = vmatpush1.msra.mxu0 %v150
    %152 = vmatprep.subr.mxu0 0.0
    %v153 = vand.u32 %v78, 4294901760
    %154 = vmatpush1.msra.mxu0 %v153
    %155 = vmatprep.subr.mxu0 0.0
    %v156 = vand.u32 %v79, 4294901760
    %157 = vmatpush1.msra.mxu0 %v156
    %158 = vmatprep.subr.mxu0 0.0
    %v159 = vand.u32 %v80, 4294901760
    %160 = vmatpush1.msra.mxu0 %v159
    %161 = vmatprep.subr.mxu0 0.0
    %v162 = vand.u32 %v81, 4294901760
    %163 = vmatpush1.msra.mxu0 %v162
    %164 = vmatprep.subr.mxu0 0.0
    %v165 = vand.u32 %v82, 4294901760
    %166 = vmatpush1.msra.mxu0 %v165
    %167 = vmatprep.subr.mxu0 0.0
    %v168 = vand.u32 %v83, 4294901760
    %169 = vmatpush1.msra.mxu0 %v168
    %170 = vmatprep.subr.mxu0 0.0
    %v171 = vand.u32 %v84, 4294901760
    %172 = vmatpush1.msra.mxu0 %v171
    %173 = vmatprep.subr.mxu0 0.0
    %v174 = vand.u32 %v85, 4294901760
    %175 = vmatpush1.msra.mxu0 %v174
    %176 = vmatprep.subr.mxu0 0.0
    %v177 = vand.u32 %v86, 4294901760
    %178 = vmatpush1.msra.mxu0 %v177
    %179 = vmatprep.subr.mxu0 0.0
    %v180 = vand.u32 %v87, 4294901760
    %181 = vmatpush1.msra.mxu0 %v180
    %182 = vmatprep.subr.mxu0 0.0
    %v183 = vand.u32 %v88, 4294901760
    %184 = vmatpush1.msra.mxu0 %v183
    %185 = vmatprep.subr.mxu0 0.0
    %v186 = vand.u32 %v89, 4294901760
    %187 = vmatpush1.msra.mxu0 %v186
    %188 = vmatprep.subr.mxu0 0.0
    %v189 = vand.u32 %v90, 4294901760
    %190 = vmatpush1.msra.mxu0 %v189
    %191 = vmatprep.subr.mxu0 0.0
    %v192 = vand.u32 %v91, 4294901760
    %193 = vmatpush1.msra.mxu0 %v192
    %194 = vmatprep.subr.mxu0 0.0
    %v195 = vand.u32 %v92, 4294901760
    %196 = vmatpush1.msra.mxu0 %v195
    %v197 = vand.u32 %v99, 4294901760
    %v198 = vsub.f32 %v99, %v197
    %v199 = vand.u32 %v198, 4294901760
    %v200 = vsub.f32 %v198, %v199
    %v201 = vand.u32 %v200, 4294901760
    %202 = vmatprep.mubr.f32.mxu0 %v201
    %v203 = vand.u32 %v60, 4294901760
    %v204 = vsub.f32 %v60, %v203
    %v205 = vand.u32 %v204, 4294901760
    %v206 = vsub.f32 %v204, %v205
    %v207 = vand.u32 %v206, 4294901760
    %208 = vmatmul.mubr.f32.gmra.mrb[0].mxu0 %v207
    %v209 = vpop.f32.mrb[0].mxu0
    %v210 = vadd.f32 %v97, %v209
    %v211 = vpop.f32.mrb[0].mxu0
    %212 = vdwg.mxu0
    %213 = vmatprep.subr.mxu0 0.0
    %v214 = vand.u32 %v61, 4294901760
    %v215 = vsub.f32 %v61, %v214
    %v216 = vand.u32 %v215, 4294901760
    %v217 = vsub.f32 %v215, %v216
    %v218 = vand.u32 %v217, 4294901760
    %219 = vmatpush1.msra.mxu0 %v218
    %220 = vmatprep.subr.mxu0 0.0
    %v221 = vand.u32 %v62, 4294901760
    %v222 = vsub.f32 %v62, %v221
    %v223 = vand.u32 %v222, 4294901760
    %v224 = vsub.f32 %v222, %v223
    %v225 = vand.u32 %v224, 4294901760
    %226 = vmatpush1.msra.mxu0 %v225
    %227 = vmatprep.subr.mxu0 0.0
    %v228 = vand.u32 %v63, 4294901760
    %v229 = vsub.f32 %v63, %v228
    %v230 = vand.u32 %v229, 4294901760
    %v231 = vsub.f32 %v229, %v230
    %v232 = vand.u32 %v231, 4294901760
    %233 = vmatpush1.msra.mxu0 %v232
    %234 = vmatprep.subr.mxu0 0.0
    %v235 = vand.u32 %v64, 4294901760
    %v236 = vsub.f32 %v64, %v235
    %v237 = vand.u32 %v236, 4294901760
    %v238 = vsub.f32 %v236, %v237
    %v239 = vand.u32 %v238, 4294901760
    %240 = vmatpush1.msra.mxu0 %v239
    %241 = vmatprep.subr.mxu0 0.0
    %v242 = vand.u32 %v65, 4294901760
    %v243 = vsub.f32 %v65, %v242
    %v244 = vand.u32 %v243, 4294901760
    %v245 = vsub.f32 %v243, %v244
    %v246 = vand.u32 %v245, 4294901760
    %247 = vmatpush1.msra.mxu0 %v246
    %248 = vmatprep.subr.mxu0 0.0
    %v249 = vand.u32 %v66, 4294901760
    %v250 = vsub.f32 %v66, %v249
    %v251 = vand.u32 %v250, 4294901760
    %v252 = vsub.f32 %v250, %v251
    %v253 = vand.u32 %v252, 4294901760
    %254 = vmatpush1.msra.mxu0 %v253
    %255 = vmatprep.subr.mxu0 0.0
    %v256 = vand.u32 %v67, 4294901760
    %v257 = vsub.f32 %v67, %v256
    %v258 = vand.u32 %v257, 4294901760
    %v259 = vsub.f32 %v257, %v258
    %v260 = vand.u32 %v259, 4294901760
    %261 = vmatpush1.msra.mxu0 %v260
    %262 = vmatprep.subr.mxu0 0.0
    %v263 = vand.u32 %v68, 4294901760
    %v264 = vsub.f32 %v68, %v263
    %v265 = vand.u32 %v264, 4294901760
    %v266 = vsub.f32 %v264, %v265
    %v267 = vand.u32 %v266, 4294901760
    %268 = vmatpush1.msra.mxu0 %v267
    %269 = vmatprep.subr.mxu0 0.0
    %v270 = vand.u32 %v69, 4294901760
    %v271 = vsub.f32 %v69, %v270
    %v272 = vand.u32 %v271, 4294901760
    %v273 = vsub.f32 %v271, %v272
    %v274 = vand.u32 %v273, 4294901760
    %275 = vmatpush1.msra.mxu0 %v274
    %276 = vmatprep.subr.mxu0 0.0
    %v277 = vand.u32 %v70, 4294901760
    %v278 = vsub.f32 %v70, %v277
    %v279 = vand.u32 %v278, 4294901760
    %v280 = vsub.f32 %v278, %v279
    %v281 = vand.u32 %v280, 4294901760
    %282 = vmatpush1.msra.mxu0 %v281
    %283 = vmatprep.subr.mxu0 0.0
    %v284 = vand.u32 %v71, 4294901760
    %v285 = vsub.f32 %v71, %v284
    %v286 = vand.u32 %v285, 4294901760
    %v287 = vsub.f32 %v285, %v286
    %v288 = vand.u32 %v287, 4294901760
    %289 = vmatpush1.msra.mxu0 %v288
    %290 = vmatprep.subr.mxu0 0.0
    %v291 = vand.u32 %v72, 4294901760
    %v292 = vsub.f32 %v72, %v291
    %v293 = vand.u32 %v292, 4294901760
    %v294 = vsub.f32 %v292, %v293
    %v295 = vand.u32 %v294, 4294901760
    %296 = vmatpush1.msra.mxu0 %v295
    %297 = vmatprep.subr.mxu0 0.0
    %v298 = vand.u32 %v73, 4294901760
    %v299 = vsub.f32 %v73, %v298
    %v300 = vand.u32 %v299, 4294901760
    %v301 = vsub.f32 %v299, %v300
    %v302 = vand.u32 %v301, 4294901760
    %303 = vmatpush1.msra.mxu0 %v302
    %304 = vmatprep.subr.mxu0 0.0
    %v305 = vand.u32 %v74, 4294901760
    %v306 = vsub.f32 %v74, %v305
    %v307 = vand.u32 %v306, 4294901760
    %v308 = vsub.f32 %v306, %v307
    %v309 = vand.u32 %v308, 4294901760
    %310 = vmatpush1.msra.mxu0 %v309
    %311 = vmatprep.subr.mxu0 0.0
    %v312 = vand.u32 %v75, 4294901760
    %v313 = vsub.f32 %v75, %v312
    %v314 = vand.u32 %v313, 4294901760
    %v315 = vsub.f32 %v313, %v314
    %v316 = vand.u32 %v315, 4294901760
    %317 = vmatpush1.msra.mxu0 %v316
    %318 = vmatprep.subr.mxu0 0.0
    %v319 = vand.u32 %v76, 4294901760
    %v320 = vsub.f32 %v76, %v319
    %v321 = vand.u32 %v320, 4294901760
    %v322 = vsub.f32 %v320, %v321
    %v323 = vand.u32 %v322, 4294901760
    %324 = vmatpush1.msra.mxu0 %v323
    %325 = vmatprep.subr.mxu0 0.0
    %v326 = vand.u32 %v77, 4294901760
    %v327 = vsub.f32 %v77, %v326
    %v328 = vand.u32 %v327, 4294901760
    %v329 = vsub.f32 %v327, %v328
    %v330 = vand.u32 %v329, 4294901760
    %331 = vmatpush1.msra.mxu0 %v330
    %332 = vmatprep.subr.mxu0 0.0
    %v333 = vand.u32 %v78, 4294901760
    %v334 = vsub.f32 %v78, %v333
    %v335 = vand.u32 %v334, 4294901760
    %v336 = vsub.f32 %v334, %v335
    %v337 = vand.u32 %v336, 4294901760
    %338 = vmatpush1.msra.mxu0 %v337
    %339 = vmatprep.subr.mxu0 0.0
    %v340 = vand.u32 %v79, 4294901760
    %v341 = vsub.f32 %v79, %v340
    %v342 = vand.u32 %v341, 4294901760
    %v343 = vsub.f32 %v341, %v342
    %v344 = vand.u32 %v343, 4294901760
    %345 = vmatpush1.msra.mxu0 %v344
    %346 = vmatprep.subr.mxu0 0.0
    %v347 = vand.u32 %v80, 4294901760
    %v348 = vsub.f32 %v80, %v347
    %v349 = vand.u32 %v348, 4294901760
    %v350 = vsub.f32 %v348, %v349
    %v351 = vand.u32 %v350, 4294901760
    %352 = vmatpush1.msra.mxu0 %v351
    %353 = vmatprep.subr.mxu0 0.0
    %v354 = vand.u32 %v81, 4294901760
    %v355 = vsub.f32 %v81, %v354
    %v356 = vand.u32 %v355, 4294901760
    %v357 = vsub.f32 %v355, %v356
    %v358 = vand.u32 %v357, 4294901760
    %359 = vmatpush1.msra.mxu0 %v358
    %360 = vmatprep.subr.mxu0 0.0
    %v361 = vand.u32 %v82, 4294901760
    %v362 = vsub.f32 %v82, %v361
    %v363 = vand.u32 %v362, 4294901760
    %v364 = vsub.f32 %v362, %v363
    %v365 = vand.u32 %v364, 4294901760
    %366 = vmatpush1.msra.mxu0 %v365
    %367 = vmatprep.subr.mxu0 0.0
    %v368 = vand.u32 %v83, 4294901760
    %v369 = vsub.f32 %v83, %v368
    %v370 = vand.u32 %v369, 4294901760
    %v371 = vsub.f32 %v369, %v370
    %v372 = vand.u32 %v371, 4294901760
    %373 = vmatpush1.msra.mxu0 %v372
    %374 = vmatprep.subr.mxu0 0.0
    %v375 = vand.u32 %v84, 4294901760
    %v376 = vsub.f32 %v84, %v375
    %v377 = vand.u32 %v376, 4294901760
    %v378 = vsub.f32 %v376, %v377
    %v379 = vand.u32 %v378, 4294901760
    %380 = vmatpush1.msra.mxu0 %v379
    %381 = vmatprep.subr.mxu0 0.0
    %v382 = vand.u32 %v85, 4294901760
    %v383 = vsub.f32 %v85, %v382
    %v384 = vand.u32 %v383, 4294901760
    %v385 = vsub.f32 %v383, %v384
    %v386 = vand.u32 %v385, 4294901760
    %387 = vmatpush1.msra.mxu0 %v386
    %388 = vmatprep.subr.mxu0 0.0
    %v389 = vand.u32 %v86, 4294901760
    %v390 = vsub.f32 %v86, %v389
    %v391 = vand.u32 %v390, 4294901760
    %v392 = vsub.f32 %v390, %v391
    %v393 = vand.u32 %v392, 4294901760
    %394 = vmatpush1.msra.mxu0 %v393
    %395 = vmatprep.subr.mxu0 0.0
    %v396 = vand.u32 %v87, 4294901760
    %v397 = vsub.f32 %v87, %v396
    %v398 = vand.u32 %v397, 4294901760
    %v399 = vsub.f32 %v397, %v398
    %v400 = vand.u32 %v399, 4294901760
    %401 = vmatpush1.msra.mxu0 %v400
    %402 = vmatprep.subr.mxu0 0.0
    %v403 = vand.u32 %v88, 4294901760
    %v404 = vsub.f32 %v88, %v403
    %v405 = vand.u32 %v404, 4294901760
    %v406 = vsub.f32 %v404, %v405
    %v407 = vand.u32 %v406, 4294901760
    %408 = vmatpush1.msra.mxu0 %v407
    %409 = vmatprep.subr.mxu0 0.0
    %v410 = vand.u32 %v89, 4294901760
    %v411 = vsub.f32 %v89, %v410
    %v412 = vand.u32 %v411, 4294901760
    %v413 = vsub.f32 %v411, %v412
    %v414 = vand.u32 %v413, 4294901760
    %415 = vmatpush1.msra.mxu0 %v414
    %416 = vmatprep.subr.mxu0 0.0
    %v417 = vand.u32 %v90, 4294901760
    %v418 = vsub.f32 %v90, %v417
    %v419 = vand.u32 %v418, 4294901760
    %v420 = vsub.f32 %v418, %v419
    %v421 = vand.u32 %v420, 4294901760
    %422 = vmatpush1.msra.mxu0 %v421
    %423 = vmatprep.subr.mxu0 0.0
    %v424 = vand.u32 %v91, 4294901760
    %v425 = vsub.f32 %v91, %v424
    %v426 = vand.u32 %v425, 4294901760
    %v427 = vsub.f32 %v425, %v426
    %v428 = vand.u32 %v427, 4294901760
    %429 = vmatpush1.msra.mxu0 %v428
    %430 = vmatprep.subr.mxu0 0.0
    %v431 = vand.u32 %v92, 4294901760
    %v432 = vsub.f32 %v92, %v431
    %v433 = vand.u32 %v432, 4294901760
    %v434 = vsub.f32 %v432, %v433
    %v435 = vand.u32 %v434, 4294901760
    %436 = vmatpush1.msra.mxu0 %v435
    %v437 = vand.u32 %v99, 4294901760
    %438 = vmatprep.mubr.f32.mxu0 %v437
    %v439 = vand.u32 %v60, 4294901760
    %440 = vmatmul.mubr.f32.gmra.mrb[0].mxu0 %v439
    %v441 = vpop.f32.mrb[0].mxu0
    %v442 = vadd.f32 %v210, %v441
    %v443 = vpop.f32.mrb[0].mxu0
    %444 = vdwg.mxu0
    %445 = vmatprep.subr.mxu0 0.0
    %v446 = vand.u32 %v61, 4294901760
    %v447 = vsub.f32 %v61, %v446
    %448 = vmatpush1.msra.mxu0 %v447
    %449 = vmatprep.subr.mxu0 0.0
    %v450 = vand.u32 %v62, 4294901760
    %v451 = vsub.f32 %v62, %v450
    %452 = vmatpush1.msra.mxu0 %v451
    %453 = vmatprep.subr.mxu0 0.0
    %v454 = vand.u32 %v63, 4294901760
    %v455 = vsub.f32 %v63, %v454
    %456 = vmatpush1.msra.mxu0 %v455
    %457 = vmatprep.subr.mxu0 0.0
    %v458 = vand.u32 %v64, 4294901760
    %v459 = vsub.f32 %v64, %v458
    %460 = vmatpush1.msra.mxu0 %v459
    %461 = vmatprep.subr.mxu0 0.0
    %v462 = vand.u32 %v65, 4294901760
    %v463 = vsub.f32 %v65, %v462
    %464 = vmatpush1.msra.mxu0 %v463
    %465 = vmatprep.subr.mxu0 0.0
    %v466 = vand.u32 %v66, 4294901760
    %v467 = vsub.f32 %v66, %v466
    %468 = vmatpush1.msra.mxu0 %v467
    %469 = vmatprep.subr.mxu0 0.0
    %v470 = vand.u32 %v67, 4294901760
    %v471 = vsub.f32 %v67, %v470
    %472 = vmatpush1.msra.mxu0 %v471
    %473 = vmatprep.subr.mxu0 0.0
    %v474 = vand.u32 %v68, 4294901760
    %v475 = vsub.f32 %v68, %v474
    %476 = vmatpush1.msra.mxu0 %v475
    %477 = vmatprep.subr.mxu0 0.0
    %v478 = vand.u32 %v69, 4294901760
    %v479 = vsub.f32 %v69, %v478
    %480 = vmatpush1.msra.mxu0 %v479
    %481 = vmatprep.subr.mxu0 0.0
    %v482 = vand.u32 %v70, 4294901760
    %v483 = vsub.f32 %v70, %v482
    %484 = vmatpush1.msra.mxu0 %v483
    %485 = vmatprep.subr.mxu0 0.0
    %v486 = vand.u32 %v71, 4294901760
    %v487 = vsub.f32 %v71, %v486
    %488 = vmatpush1.msra.mxu0 %v487
    %489 = vmatprep.subr.mxu0 0.0
    %v490 = vand.u32 %v72, 4294901760
    %v491 = vsub.f32 %v72, %v490
    %492 = vmatpush1.msra.mxu0 %v491
    %493 = vmatprep.subr.mxu0 0.0
    %v494 = vand.u32 %v73, 4294901760
    %v495 = vsub.f32 %v73, %v494
    %496 = vmatpush1.msra.mxu0 %v495
    %497 = vmatprep.subr.mxu0 0.0
    %v498 = vand.u32 %v74, 4294901760
    %v499 = vsub.f32 %v74, %v498
    %500 = vmatpush1.msra.mxu0 %v499
    %501 = vmatprep.subr.mxu0 0.0
    %v502 = vand.u32 %v75, 4294901760
    %v503 = vsub.f32 %v75, %v502
    %504 = vmatpush1.msra.mxu0 %v503
    %505 = vmatprep.subr.mxu0 0.0
    %v506 = vand.u32 %v76, 4294901760
    %v507 = vsub.f32 %v76, %v506
    %508 = vmatpush1.msra.mxu0 %v507
    %509 = vmatprep.subr.mxu0 0.0
    %v510 = vand.u32 %v77, 4294901760
    %v511 = vsub.f32 %v77, %v510
    %512 = vmatpush1.msra.mxu0 %v511
    %513 = vmatprep.subr.mxu0 0.0
    %v514 = vand.u32 %v78, 4294901760
    %v515 = vsub.f32 %v78, %v514
    %516 = vmatpush1.msra.mxu0 %v515
    %517 = vmatprep.subr.mxu0 0.0
    %v518 = vand.u32 %v79, 4294901760
    %v519 = vsub.f32 %v79, %v518
    %520 = vmatpush1.msra.mxu0 %v519
    %521 = vmatprep.subr.mxu0 0.0
    %v522 = vand.u32 %v80, 4294901760
    %v523 = vsub.f32 %v80, %v522
    %524 = vmatpush1.msra.mxu0 %v523
    %525 = vmatprep.subr.mxu0 0.0
    %v526 = vand.u32 %v81, 4294901760
    %v527 = vsub.f32 %v81, %v526
    %528 = vmatpush1.msra.mxu0 %v527
    %529 = vmatprep.subr.mxu0 0.0
    %v530 = vand.u32 %v82, 4294901760
    %v531 = vsub.f32 %v82, %v530
    %532 = vmatpush1.msra.mxu0 %v531
    %533 = vmatprep.subr.mxu0 0.0
    %v534 = vand.u32 %v83, 4294901760
    %v535 = vsub.f32 %v83, %v534
    %536 = vmatpush1.msra.mxu0 %v535
    %537 = vmatprep.subr.mxu0 0.0
    %v538 = vand.u32 %v84, 4294901760
    %v539 = vsub.f32 %v84, %v538
    %540 = vmatpush1.msra.mxu0 %v539
    %541 = vmatprep.subr.mxu0 0.0
    %v542 = vand.u32 %v85, 4294901760
    %v543 = vsub.f32 %v85, %v542
    %544 = vmatpush1.msra.mxu0 %v543
    %545 = vmatprep.subr.mxu0 0.0
    %v546 = vand.u32 %v86, 4294901760
    %v547 = vsub.f32 %v86, %v546
    %548 = vmatpush1.msra.mxu0 %v547
    %549 = vmatprep.subr.mxu0 0.0
    %v550 = vand.u32 %v87, 4294901760
    %v551 = vsub.f32 %v87, %v550
    %552 = vmatpush1.msra.mxu0 %v551
    %553 = vmatprep.subr.mxu0 0.0
    %v554 = vand.u32 %v88, 4294901760
    %v555 = vsub.f32 %v88, %v554
    %556 = vmatpush1.msra.mxu0 %v555
    %557 = vmatprep.subr.mxu0 0.0
    %v558 = vand.u32 %v89, 4294901760
    %v559 = vsub.f32 %v89, %v558
    %560 = vmatpush1.msra.mxu0 %v559
    %561 = vmatprep.subr.mxu0 0.0
    %v562 = vand.u32 %v90, 4294901760
    %v563 = vsub.f32 %v90, %v562
    %564 = vmatpush1.msra.mxu0 %v563
    %565 = vmatprep.subr.mxu0 0.0
    %v566 = vand.u32 %v91, 4294901760
    %v567 = vsub.f32 %v91, %v566
    %568 = vmatpush1.msra.mxu0 %v567
    %569 = vmatprep.subr.mxu0 0.0
    %v570 = vand.u32 %v92, 4294901760
    %v571 = vsub.f32 %v92, %v570
    %572 = vmatpush1.msra.mxu0 %v571
    %v573 = vand.u32 %v99, 4294901760
    %v574 = vsub.f32 %v99, %v573
    %575 = vmatprep.mubr.f32.mxu0 %v574
    %v576 = vand.u32 %v60, 4294901760
    %v577 = vsub.f32 %v60, %v576
    %578 = vmatmul.mubr.f32.gmra.mrb[0].mxu0 %v577
    %v579 = vpop.f32.mrb[0].mxu0
    %v580 = vadd.f32 %v442, %v579
    %v581 = vpop.f32.mrb[0].mxu0
    %582 = vdwg.mxu0
    %583 = vmatprep.subr.mxu0 0.0
    %v584 = vand.u32 %v61, 4294901760
    %585 = vmatpush1.msra.mxu0 %v584
    %586 = vmatprep.subr.mxu0 0.0
    %v587 = vand.u32 %v62, 4294901760
    %588 = vmatpush1.msra.mxu0 %v587
    %589 = vmatprep.subr.mxu0 0.0
    %v590 = vand.u32 %v63, 4294901760
    %591 = vmatpush1.msra.mxu0 %v590
    %592 = vmatprep.subr.mxu0 0.0
    %v593 = vand.u32 %v64, 4294901760
    %594 = vmatpush1.msra.mxu0 %v593
    %595 = vmatprep.subr.mxu0 0.0
    %v596 = vand.u32 %v65, 4294901760
    %597 = vmatpush1.msra.mxu0 %v596
    %598 = vmatprep.subr.mxu0 0.0
    %v599 = vand.u32 %v66, 4294901760
    %600 = vmatpush1.msra.mxu0 %v599
    %601 = vmatprep.subr.mxu0 0.0
    %v602 = vand.u32 %v67, 4294901760
    %603 = vmatpush1.msra.mxu0 %v602
    %604 = vmatprep.subr.mxu0 0.0
    %v605 = vand.u32 %v68, 4294901760
    %606 = vmatpush1.msra.mxu0 %v605
    %607 = vmatprep.subr.mxu0 0.0
    %v608 = vand.u32 %v69, 4294901760
    %609 = vmatpush1.msra.mxu0 %v608
    %610 = vmatprep.subr.mxu0 0.0
    %v611 = vand.u32 %v70, 4294901760
    %612 = vmatpush1.msra.mxu0 %v611
    %613 = vmatprep.subr.mxu0 0.0
    %v614 = vand.u32 %v71, 4294901760
    %615 = vmatpush1.msra.mxu0 %v614
    %616 = vmatprep.subr.mxu0 0.0
    %v617 = vand.u32 %v72, 4294901760
    %618 = vmatpush1.msra.mxu0 %v617
    %619 = vmatprep.subr.mxu0 0.0
    %v620 = vand.u32 %v73, 4294901760
    %621 = vmatpush1.msra.mxu0 %v620
    %622 = vmatprep.subr.mxu0 0.0
    %v623 = vand.u32 %v74, 4294901760
    %624 = vmatpush1.msra.mxu0 %v623
    %625 = vmatprep.subr.mxu0 0.0
    %v626 = vand.u32 %v75, 4294901760
    %627 = vmatpush1.msra.mxu0 %v626
    %628 = vmatprep.subr.mxu0 0.0
    %v629 = vand.u32 %v76, 4294901760
    %630 = vmatpush1.msra.mxu0 %v629
    %631 = vmatprep.subr.mxu0 0.0
    %v632 = vand.u32 %v77, 4294901760
    %633 = vmatpush1.msra.mxu0 %v632
    %634 = vmatprep.subr.mxu0 0.0
    %v635 = vand.u32 %v78, 4294901760
    %636 = vmatpush1.msra.mxu0 %v635
    %637 = vmatprep.subr.mxu0 0.0
    %v638 = vand.u32 %v79, 4294901760
    %639 = vmatpush1.msra.mxu0 %v638
    %640 = vmatprep.subr.mxu0 0.0
    %v641 = vand.u32 %v80, 4294901760
    %642 = vmatpush1.msra.mxu0 %v641
    %643 = vmatprep.subr.mxu0 0.0
    %v644 = vand.u32 %v81, 4294901760
    %645 = vmatpush1.msra.mxu0 %v644
    %646 = vmatprep.subr.mxu0 0.0
    %v647 = vand.u32 %v82, 4294901760
    %648 = vmatpush1.msra.mxu0 %v647
    %649 = vmatprep.subr.mxu0 0.0
    %v650 = vand.u32 %v83, 4294901760
    %651 = vmatpush1.msra.mxu0 %v650
    %652 = vmatprep.subr.mxu0 0.0
    %v653 = vand.u32 %v84, 4294901760
    %654 = vmatpush1.msra.mxu0 %v653
    %655 = vmatprep.subr.mxu0 0.0
    %v656 = vand.u32 %v85, 4294901760
    %657 = vmatpush1.msra.mxu0 %v656
    %658 = vmatprep.subr.mxu0 0.0
    %v659 = vand.u32 %v86, 4294901760
    %660 = vmatpush1.msra.mxu0 %v659
    %661 = vmatprep.subr.mxu0 0.0
    %v662 = vand.u32 %v87, 4294901760
    %663 = vmatpush1.msra.mxu0 %v662
    %664 = vmatprep.subr.mxu0 0.0
    %v665 = vand.u32 %v88, 4294901760
    %666 = vmatpush1.msra.mxu0 %v665
    %667 = vmatprep.subr.mxu0 0.0
    %v668 = vand.u32 %v89, 4294901760
    %669 = vmatpush1.msra.mxu0 %v668
    %670 = vmatprep.subr.mxu0 0.0
    %v671 = vand.u32 %v90, 4294901760
    %672 = vmatpush1.msra.mxu0 %v671
    %673 = vmatprep.subr.mxu0 0.0
    %v674 = vand.u32 %v91, 4294901760
    %675 = vmatpush1.msra.mxu0 %v674
    %676 = vmatprep.subr.mxu0 0.0
    %v677 = vand.u32 %v92, 4294901760
    %678 = vmatpush1.msra.mxu0 %v677
    %v679 = vand.u32 %v99, 4294901760
    %v680 = vsub.f32 %v99, %v679
    %v681 = vand.u32 %v680, 4294901760
    %682 = vmatprep.mubr.f32.mxu0 %v681
    %v683 = vand.u32 %v60, 4294901760
    %v684 = vsub.f32 %v60, %v683
    %v685 = vand.u32 %v684, 4294901760
    %686 = vmatmul.mubr.f32.gmra.mrb[0].mxu0 %v685
    %v687 = vpop.f32.mrb[0].mxu0
    %v688 = vadd.f32 %v580, %v687
    %v689 = vpop.f32.mrb[0].mxu0
    %690 = vdwg.mxu0
    %691 = vmatprep.subr.mxu0 0.0
    %v692 = vand.u32 %v61, 4294901760
    %v693 = vsub.f32 %v61, %v692
    %v694 = vand.u32 %v693, 4294901760
    %695 = vmatpush1.msra.mxu0 %v694
    %696 = vmatprep.subr.mxu0 0.0
    %v697 = vand.u32 %v62, 4294901760
    %v698 = vsub.f32 %v62, %v697
    %v699 = vand.u32 %v698, 4294901760
    %700 = vmatpush1.msra.mxu0 %v699
    %701 = vmatprep.subr.mxu0 0.0
    %v702 = vand.u32 %v63, 4294901760
    %v703 = vsub.f32 %v63, %v702
    %v704 = vand.u32 %v703, 4294901760
    %705 = vmatpush1.msra.mxu0 %v704
    %706 = vmatprep.subr.mxu0 0.0
    %v707 = vand.u32 %v64, 4294901760
    %v708 = vsub.f32 %v64, %v707
    %v709 = vand.u32 %v708, 4294901760
    %710 = vmatpush1.msra.mxu0 %v709
    %711 = vmatprep.subr.mxu0 0.0
    %v712 = vand.u32 %v65, 4294901760
    %v713 = vsub.f32 %v65, %v712
    %v714 = vand.u32 %v713, 4294901760
    %715 = vmatpush1.msra.mxu0 %v714
    %716 = vmatprep.subr.mxu0 0.0
    %v717 = vand.u32 %v66, 4294901760
    %v718 = vsub.f32 %v66, %v717
    %v719 = vand.u32 %v718, 4294901760
    %720 = vmatpush1.msra.mxu0 %v719
    %721 = vmatprep.subr.mxu0 0.0
    %v722 = vand.u32 %v67, 4294901760
    %v723 = vsub.f32 %v67, %v722
    %v724 = vand.u32 %v723, 4294901760
    %725 = vmatpush1.msra.mxu0 %v724
    %726 = vmatprep.subr.mxu0 0.0
    %v727 = vand.u32 %v68, 4294901760
    %v728 = vsub.f32 %v68, %v727
    %v729 = vand.u32 %v728, 4294901760
    %730 = vmatpush1.msra.mxu0 %v729
    %731 = vmatprep.subr.mxu0 0.0
    %v732 = vand.u32 %v69, 4294901760
    %v733 = vsub.f32 %v69, %v732
    %v734 = vand.u32 %v733, 4294901760
    %735 = vmatpush1.msra.mxu0 %v734
    %736 = vmatprep.subr.mxu0 0.0
    %v737 = vand.u32 %v70, 4294901760
    %v738 = vsub.f32 %v70, %v737
    %v739 = vand.u32 %v738, 4294901760
    %740 = vmatpush1.msra.mxu0 %v739
    %741 = vmatprep.subr.mxu0 0.0
    %v742 = vand.u32 %v71, 4294901760
    %v743 = vsub.f32 %v71, %v742
    %v744 = vand.u32 %v743, 4294901760
    %745 = vmatpush1.msra.mxu0 %v744
    %746 = vmatprep.subr.mxu0 0.0
    %v747 = vand.u32 %v72, 4294901760
    %v748 = vsub.f32 %v72, %v747
    %v749 = vand.u32 %v748, 4294901760
    %750 = vmatpush1.msra.mxu0 %v749
    %751 = vmatprep.subr.mxu0 0.0
    %v752 = vand.u32 %v73, 4294901760
    %v753 = vsub.f32 %v73, %v752
    %v754 = vand.u32 %v753, 4294901760
    %755 = vmatpush1.msra.mxu0 %v754
    %756 = vmatprep.subr.mxu0 0.0
    %v757 = vand.u32 %v74, 4294901760
    %v758 = vsub.f32 %v74, %v757
    %v759 = vand.u32 %v758, 4294901760
    %760 = vmatpush1.msra.mxu0 %v759
    %761 = vmatprep.subr.mxu0 0.0
    %v762 = vand.u32 %v75, 4294901760
    %v763 = vsub.f32 %v75, %v762
    %v764 = vand.u32 %v763, 4294901760
    %765 = vmatpush1.msra.mxu0 %v764
    %766 = vmatprep.subr.mxu0 0.0
    %v767 = vand.u32 %v76, 4294901760
    %v768 = vsub.f32 %v76, %v767
    %v769 = vand.u32 %v768, 4294901760
    %770 = vmatpush1.msra.mxu0 %v769
    %771 = vmatprep.subr.mxu0 0.0
    %v772 = vand.u32 %v77, 4294901760
    %v773 = vsub.f32 %v77, %v772
    %v774 = vand.u32 %v773, 4294901760
    %775 = vmatpush1.msra.mxu0 %v774
    %776 = vmatprep.subr.mxu0 0.0
    %v777 = vand.u32 %v78, 4294901760
    %v778 = vsub.f32 %v78, %v777
    %v779 = vand.u32 %v778, 4294901760
    %780 = vmatpush1.msra.mxu0 %v779
    %781 = vmatprep.subr.mxu0 0.0
    %v782 = vand.u32 %v79, 4294901760
    %v783 = vsub.f32 %v79, %v782
    %v784 = vand.u32 %v783, 4294901760
    %785 = vmatpush1.msra.mxu0 %v784
    %786 = vmatprep.subr.mxu0 0.0
    %v787 = vand.u32 %v80, 4294901760
    %v788 = vsub.f32 %v80, %v787
    %v789 = vand.u32 %v788, 4294901760
    %790 = vmatpush1.msra.mxu0 %v789
    %791 = vmatprep.subr.mxu0 0.0
    %v792 = vand.u32 %v81, 4294901760
    %v793 = vsub.f32 %v81, %v792
    %v794 = vand.u32 %v793, 4294901760
    %795 = vmatpush1.msra.mxu0 %v794
    %796 = vmatprep.subr.mxu0 0.0
    %v797 = vand.u32 %v82, 4294901760
    %v798 = vsub.f32 %v82, %v797
    %v799 = vand.u32 %v798, 4294901760
    %800 = vmatpush1.msra.mxu0 %v799
    %801 = vmatprep.subr.mxu0 0.0
    %v802 = vand.u32 %v83, 4294901760
    %v803 = vsub.f32 %v83, %v802
    %v804 = vand.u32 %v803, 4294901760
    %805 = vmatpush1.msra.mxu0 %v804
    %806 = vmatprep.subr.mxu0 0.0
    %v807 = vand.u32 %v84, 4294901760
    %v808 = vsub.f32 %v84, %v807
    %v809 = vand.u32 %v808, 4294901760
    %810 = vmatpush1.msra.mxu0 %v809
    %811 = vmatprep.subr.mxu0 0.0
    %v812 = vand.u32 %v85, 4294901760
    %v813 = vsub.f32 %v85, %v812
    %v814 = vand.u32 %v813, 4294901760
    %815 = vmatpush1.msra.mxu0 %v814
    %816 = vmatprep.subr.mxu0 0.0
    %v817 = vand.u32 %v86, 4294901760
    %v818 = vsub.f32 %v86, %v817
    %v819 = vand.u32 %v818, 4294901760
    %820 = vmatpush1.msra.mxu0 %v819
    %821 = vmatprep.subr.mxu0 0.0
    %v822 = vand.u32 %v87, 4294901760
    %v823 = vsub.f32 %v87, %v822
    %v824 = vand.u32 %v823, 4294901760
    %825 = vmatpush1.msra.mxu0 %v824
    %826 = vmatprep.subr.mxu0 0.0
    %v827 = vand.u32 %v88, 4294901760
    %v828 = vsub.f32 %v88, %v827
    %v829 = vand.u32 %v828, 4294901760
    %830 = vmatpush1.msra.mxu0 %v829
    %831 = vmatprep.subr.mxu0 0.0
    %v832 = vand.u32 %v89, 4294901760
    %v833 = vsub.f32 %v89, %v832
    %v834 = vand.u32 %v833, 4294901760
    %835 = vmatpush1.msra.mxu0 %v834
    %836 = vmatprep.subr.mxu0 0.0
    %v837 = vand.u32 %v90, 4294901760
    %v838 = vsub.f32 %v90, %v837
    %v839 = vand.u32 %v838, 4294901760
    %840 = vmatpush1.msra.mxu0 %v839
    %841 = vmatprep.subr.mxu0 0.0
    %v842 = vand.u32 %v91, 4294901760
    %v843 = vsub.f32 %v91, %v842
    %v844 = vand.u32 %v843, 4294901760
    %845 = vmatpush1.msra.mxu0 %v844
    %846 = vmatprep.subr.mxu0 0.0
    %v847 = vand.u32 %v92, 4294901760
    %v848 = vsub.f32 %v92, %v847
    %v849 = vand.u32 %v848, 4294901760
    %850 = vmatpush1.msra.mxu0 %v849
    %v851 = vand.u32 %v99, 4294901760
    %852 = vmatprep.mubr.f32.mxu0 %v851
    %v853 = vand.u32 %v60, 4294901760
    %854 = vmatmul.mubr.f32.gmra.mrb[0].mxu0 %v853
    %v855 = vpop.f32.mrb[0].mxu0
    %v856 = vadd.f32 %v688, %v855
    %v857 = vpop.f32.mrb[0].mxu0
    %858 = vdwg.mxu0
    %859 = vmatprep.subr.mxu0 0.0
    %v860 = vand.u32 %v61, 4294901760
    %861 = vmatpush1.msra.mxu0 %v860
    %862 = vmatprep.subr.mxu0 0.0
    %v863 = vand.u32 %v62, 4294901760
    %864 = vmatpush1.msra.mxu0 %v863
    %865 = vmatprep.subr.mxu0 0.0
    %v866 = vand.u32 %v63, 4294901760
    %867 = vmatpush1.msra.mxu0 %v866
    %868 = vmatprep.subr.mxu0 0.0
    %v869 = vand.u32 %v64, 4294901760
    %870 = vmatpush1.msra.mxu0 %v869
    %871 = vmatprep.subr.mxu0 0.0
    %v872 = vand.u32 %v65, 4294901760
    %873 = vmatpush1.msra.mxu0 %v872
    %874 = vmatprep.subr.mxu0 0.0
    %v875 = vand.u32 %v66, 4294901760
    %876 = vmatpush1.msra.mxu0 %v875
    %877 = vmatprep.subr.mxu0 0.0
    %v878 = vand.u32 %v67, 4294901760
    %879 = vmatpush1.msra.mxu0 %v878
    %880 = vmatprep.subr.mxu0 0.0
    %v881 = vand.u32 %v68, 4294901760
    %882 = vmatpush1.msra.mxu0 %v881
    %883 = vmatprep.subr.mxu0 0.0
    %v884 = vand.u32 %v69, 4294901760
    %885 = vmatpush1.msra.mxu0 %v884
    %886 = vmatprep.subr.mxu0 0.0
    %v887 = vand.u32 %v70, 4294901760
    %888 = vmatpush1.msra.mxu0 %v887
    %889 = vmatprep.subr.mxu0 0.0
    %v890 = vand.u32 %v71, 4294901760
    %891 = vmatpush1.msra.mxu0 %v890
    %892 = vmatprep.subr.mxu0 0.0
    %v893 = vand.u32 %v72, 4294901760
    %894 = vmatpush1.msra.mxu0 %v893
    %895 = vmatprep.subr.mxu0 0.0
    %v896 = vand.u32 %v73, 4294901760
    %897 = vmatpush1.msra.mxu0 %v896
    %898 = vmatprep.subr.mxu0 0.0
    %v899 = vand.u32 %v74, 4294901760
    %900 = vmatpush1.msra.mxu0 %v899
    %901 = vmatprep.subr.mxu0 0.0
    %v902 = vand.u32 %v75, 4294901760
    %903 = vmatpush1.msra.mxu0 %v902
    %904 = vmatprep.subr.mxu0 0.0
    %v905 = vand.u32 %v76, 4294901760
    %906 = vmatpush1.msra.mxu0 %v905
    %907 = vmatprep.subr.mxu0 0.0
    %v908 = vand.u32 %v77, 4294901760
    %909 = vmatpush1.msra.mxu0 %v908
    %910 = vmatprep.subr.mxu0 0.0
    %v911 = vand.u32 %v78, 4294901760
    %912 = vmatpush1.msra.mxu0 %v911
    %913 = vmatprep.subr.mxu0 0.0
    %v914 = vand.u32 %v79, 4294901760
    %915 = vmatpush1.msra.mxu0 %v914
    %916 = vmatprep.subr.mxu0 0.0
    %v917 = vand.u32 %v80, 4294901760
    %918 = vmatpush1.msra.mxu0 %v917
    %919 = vmatprep.subr.mxu0 0.0
    %v920 = vand.u32 %v81, 4294901760
    %921 = vmatpush1.msra.mxu0 %v920
    %922 = vmatprep.subr.mxu0 0.0
    %v923 = vand.u32 %v82, 4294901760
    %924 = vmatpush1.msra.mxu0 %v923
    %925 = vmatprep.subr.mxu0 0.0
    %v926 = vand.u32 %v83, 4294901760
    %927 = vmatpush1.msra.mxu0 %v926
    %928 = vmatprep.subr.mxu0 0.0
    %v929 = vand.u32 %v84, 4294901760
    %930 = vmatpush1.msra.mxu0 %v929
    %931 = vmatprep.subr.mxu0 0.0
    %v932 = vand.u32 %v85, 4294901760
    %933 = vmatpush1.msra.mxu0 %v932
    %934 = vmatprep.subr.mxu0 0.0
    %v935 = vand.u32 %v86, 4294901760
    %936 = vmatpush1.msra.mxu0 %v935
    %937 = vmatprep.subr.mxu0 0.0
    %v938 = vand.u32 %v87, 4294901760
    %939 = vmatpush1.msra.mxu0 %v938
    %940 = vmatprep.subr.mxu0 0.0
    %v941 = vand.u32 %v88, 4294901760
    %942 = vmatpush1.msra.mxu0 %v941
    %943 = vmatprep.subr.mxu0 0.0
    %v944 = vand.u32 %v89, 4294901760
    %945 = vmatpush1.msra.mxu0 %v944
    %946 = vmatprep.subr.mxu0 0.0
    %v947 = vand.u32 %v90, 4294901760
    %948 = vmatpush1.msra.mxu0 %v947
    %949 = vmatprep.subr.mxu0 0.0
    %v950 = vand.u32 %v91, 4294901760
    %951 = vmatpush1.msra.mxu0 %v950
    %952 = vmatprep.subr.mxu0 0.0
    %v953 = vand.u32 %v92, 4294901760
    %954 = vmatpush1.msra.mxu0 %v953
    %v955 = vand.u32 %v99, 4294901760
    %956 = vmatprep.mubr.f32.mxu0 %v955
    %v957 = vand.u32 %v60, 4294901760
    %958 = vmatmul.mubr.f32.gmra.mrb[0].mxu0 %v957
    %v959 = vpop.f32.mrb[0].mxu0
    %v960 = vadd.f32 %v856, %v959
    %v961 = vpop.f32.mrb[0].mxu0
    %962 = vdwg.mxu0
    %v963 = vld [vmem:[%s4] sm:$0xf]
    %v964 = vadd.f32 %v960, %v963
    %v965 = vld [vmem:[#allocation7] sm:$0xff]
    %v966 = vld [vmem:[#allocation7 + $0x8] sm:$0xff]
    %v967 = vld [vmem:[#allocation7 + $0x10] sm:$0xff]
    %v968 = vld [vmem:[#allocation7 + $0x18] sm:$0xff]
    %v969 = vld [vmem:[#allocation7 + $0x20] sm:$0xff]
    %v970 = vld [vmem:[#allocation7 + $0x28] sm:$0xff]
    %v971 = vld [vmem:[#allocation7 + $0x30] sm:$0xff]
    %v972 = vld [vmem:[#allocation7 + $0x38] sm:$0xff]
    %v973 = vld [vmem:[#allocation7 + $0x40] sm:$0xff]
    %v974 = vld [vmem:[#allocation7 + $0x48] sm:$0xff]
    %v975 = vld [vmem:[#allocation7 + $0x50] sm:$0xff]
    %v976 = vld [vmem:[#allocation7 + $0x58] sm:$0xff]
    %v977 = vld [vmem:[#allocation7 + $0x60] sm:$0xff]
    %v978 = vld [vmem:[#allocation7 + $0x68] sm:$0xff]
    %v979 = vld [vmem:[#allocation7 + $0x70] sm:$0xff]
    %v980 = vld [vmem:[#allocation7 + $0x78] sm:$0xff]
    %981 = vmatprep.subr.mxu0 0.0
    %v982 = vand.u32 %v965, 4294901760
    %983 = vmatpush1.msra.mxu0 %v982
    %984 = vmatprep.subr.mxu0 0.0
    %v985 = vand.u32 %v966, 4294901760
    %986 = vmatpush1.msra.mxu0 %v985
    %987 = vmatprep.subr.mxu0 0.0
    %v988 = vand.u32 %v967, 4294901760
    %989 = vmatpush1.msra.mxu0 %v988
    %990 = vmatprep.subr.mxu0 0.0
    %v991 = vand.u32 %v968, 4294901760
    %992 = vmatpush1.msra.mxu0 %v991
    %993 = vmatprep.subr.mxu0 0.0
    %v994 = vand.u32 %v969, 4294901760
    %995 = vmatpush1.msra.mxu0 %v994
    %996 = vmatprep.subr.mxu0 0.0
    %v997 = vand.u32 %v970, 4294901760
    %998 = vmatpush1.msra.mxu0 %v997
    %999 = vmatprep.subr.mxu0 0.0
    %v1000 = vand.u32 %v971, 4294901760
    %1001 = vmatpush1.msra.mxu0 %v1000
    %1002 = vmatprep.subr.mxu0 0.0
    %v1003 = vand.u32 %v972, 4294901760
    %1004 = vmatpush1.msra.mxu0 %v1003
    %1005 = vmatprep.subr.mxu0 0.0
    %v1006 = vand.u32 %v973, 4294901760
    %1007 = vmatpush1.msra.mxu0 %v1006
    %1008 = vmatprep.subr.mxu0 0.0
    %v1009 = vand.u32 %v974, 4294901760
    %1010 = vmatpush1.msra.mxu0 %v1009
    %1011 = vmatprep.subr.mxu0 0.0
    %v1012 = vand.u32 %v975, 4294901760
    %1013 = vmatpush1.msra.mxu0 %v1012
    %1014 = vmatprep.subr.mxu0 0.0
    %v1015 = vand.u32 %v976, 4294901760
    %1016 = vmatpush1.msra.mxu0 %v1015
    %1017 = vmatprep.subr.mxu0 0.0
    %v1018 = vand.u32 %v977, 4294901760
    %1019 = vmatpush1.msra.mxu0 %v1018
    %1020 = vmatprep.subr.mxu0 0.0
    %v1021 = vand.u32 %v978, 4294901760
    %1022 = vmatpush1.msra.mxu0 %v1021
    %1023 = vmatprep.subr.mxu0 0.0
    %v1024 = vand.u32 %v979, 4294901760
    %1025 = vmatpush1.msra.mxu0 %v1024
    %1026 = vmatprep.subr.mxu0 0.0
    %v1027 = vand.u32 %v980, 4294901760
    %1028 = vmatpush1.msra.mxu0 %v1027
    %1029 = vmatprep.subr.mxu0 0.0
    %1030 = vmatpush1.msra.mxu0 0.0
    %1031 = vmatprep.subr.mxu0 0.0
    %1032 = vmatpush1.msra.mxu0 0.0
    %1033 = vmatprep.subr.mxu0 0.0
    %1034 = vmatpush1.msra.mxu0 0.0
    %1035 = vmatprep.subr.mxu0 0.0
    %1036 = vmatpush1.msra.mxu0 0.0
    %1037 = vmatprep.subr.mxu0 0.0
    %1038 = vmatpush1.msra.mxu0 0.0
    %1039 = vmatprep.subr.mxu0 0.0
    %1040 = vmatpush1.msra.mxu0 0.0
    %1041 = vmatprep.subr.mxu0 0.0
    %1042 = vmatpush1.msra.mxu0 0.0
    %1043 = vmatprep.subr.mxu0 0.0
    %1044 = vmatpush1.msra.mxu0 0.0
    %1045 = vmatprep.subr.mxu0 0.0
    %1046 = vmatpush1.msra.mxu0 0.0
    %1047 = vmatprep.subr.mxu0 0.0
    %1048 = vmatpush1.msra.mxu0 0.0
    %1049 = vmatprep.subr.mxu0 0.0
    %1050 = vmatpush1.msra.mxu0 0.0
    %1051 = vmatprep.subr.mxu0 0.0
    %1052 = vmatpush1.msra.mxu0 0.0
    %1053 = vmatprep.subr.mxu0 0.0
    %1054 = vmatpush1.msra.mxu0 0.0
    %1055 = vmatprep.subr.mxu0 0.0
    %1056 = vmatpush1.msra.mxu0 0.0
    %1057 = vmatprep.subr.mxu0 0.0
    %1058 = vmatpush1.msra.mxu0 0.0
    %1059 = vmatprep.subr.mxu0 0.0
    %1060 = vmatpush1.msra.mxu0 0.0
    %1061 = vmatprep.mubr.f32.mxu0 0.0
    %v1062 = vand.u32 %v964, 4294901760
    %v1063 = vsub.f32 %v964, %v1062
    %v1064 = vand.u32 %v1063, 4294901760
    %v1065 = vsub.f32 %v1063, %v1064
    %v1066 = vand.u32 %v1065, 4294901760
    %1067 = vmatmul.mubr.f32.gmra.mrb[0].mxu0 %v1066
    %v1068 = vpop.f32.mrb[0].mxu0
    %v1069 = vadd.f32 0.0, %v1068
    %v1070 = vpop.f32.mrb[0].mxu0
    %1071 = vdwg.mxu0
    %1072 = vmatprep.subr.mxu0 0.0
    %v1073 = vand.u32 %v965, 4294901760
    %v1074 = vsub.f32 %v965, %v1073
    %v1075 = vand.u32 %v1074, 4294901760
    %v1076 = vsub.f32 %v1074, %v1075
    %v1077 = vand.u32 %v1076, 4294901760
    %1078 = vmatpush1.msra.mxu0 %v1077
    %1079 = vmatprep.subr.mxu0 0.0
    %v1080 = vand.u32 %v966, 4294901760
    %v1081 = vsub.f32 %v966, %v1080
    %v1082 = vand.u32 %v1081, 4294901760
    %v1083 = vsub.f32 %v1081, %v1082
    %v1084 = vand.u32 %v1083, 4294901760
    %1085 = vmatpush1.msra.mxu0 %v1084
    %1086 = vmatprep.subr.mxu0 0.0
    %v1087 = vand.u32 %v967, 4294901760
    %v1088 = vsub.f32 %v967, %v1087
    %v1089 = vand.u32 %v1088, 4294901760
    %v1090 = vsub.f32 %v1088, %v1089
    %v1091 = vand.u32 %v1090, 4294901760
    %1092 = vmatpush1.msra.mxu0 %v1091
    %1093 = vmatprep.subr.mxu0 0.0
    %v1094 = vand.u32 %v968, 4294901760
    %v1095 = vsub.f32 %v968, %v1094
    %v1096 = vand.u32 %v1095, 4294901760
    %v1097 = vsub.f32 %v1095, %v1096
    %v1098 = vand.u32 %v1097, 4294901760
    %1099 = vmatpush1.msra.mxu0 %v1098
    %1100 = vmatprep.subr.mxu0 0.0
    %v1101 = vand.u32 %v969, 4294901760
    %v1102 = vsub.f32 %v969, %v1101
    %v1103 = vand.u32 %v1102, 4294901760
    %v1104 = vsub.f32 %v1102, %v1103
    %v1105 = vand.u32 %v1104, 4294901760
    %1106 = vmatpush1.msra.mxu0 %v1105
    %1107 = vmatprep.subr.mxu0 0.0
    %v1108 = vand.u32 %v970, 4294901760
    %v1109 = vsub.f32 %v970, %v1108
    %v1110 = vand.u32 %v1109, 4294901760
    %v1111 = vsub.f32 %v1109, %v1110
    %v1112 = vand.u32 %v1111, 4294901760
    %1113 = vmatpush1.msra.mxu0 %v1112
    %1114 = vmatprep.subr.mxu0 0.0
    %v1115 = vand.u32 %v971, 4294901760
    %v1116 = vsub.f32 %v971, %v1115
    %v1117 = vand.u32 %v1116, 4294901760
    %v1118 = vsub.f32 %v1116, %v1117
    %v1119 = vand.u32 %v1118, 4294901760
    %1120 = vmatpush1.msra.mxu0 %v1119
    %1121 = vmatprep.subr.mxu0 0.0
    %v1122 = vand.u32 %v972, 4294901760
    %v1123 = vsub.f32 %v972, %v1122
    %v1124 = vand.u32 %v1123, 4294901760
    %v1125 = vsub.f32 %v1123, %v1124
    %v1126 = vand.u32 %v1125, 4294901760
    %1127 = vmatpush1.msra.mxu0 %v1126
    %1128 = vmatprep.subr.mxu0 0.0
    %v1129 = vand.u32 %v973, 4294901760
    %v1130 = vsub.f32 %v973, %v1129
    %v1131 = vand.u32 %v1130, 4294901760
    %v1132 = vsub.f32 %v1130, %v1131
    %v1133 = vand.u32 %v1132, 4294901760
    %1134 = vmatpush1.msra.mxu0 %v1133
    %1135 = vmatprep.subr.mxu0 0.0
    %v1136 = vand.u32 %v974, 4294901760
    %v1137 = vsub.f32 %v974, %v1136
    %v1138 = vand.u32 %v1137, 4294901760
    %v1139 = vsub.f32 %v1137, %v1138
    %v1140 = vand.u32 %v1139, 4294901760
    %1141 = vmatpush1.msra.mxu0 %v1140
    %1142 = vmatprep.subr.mxu0 0.0
    %v1143 = vand.u32 %v975, 4294901760
    %v1144 = vsub.f32 %v975, %v1143
    %v1145 = vand.u32 %v1144, 4294901760
    %v1146 = vsub.f32 %v1144, %v1145
    %v1147 = vand.u32 %v1146, 4294901760
    %1148 = vmatpush1.msra.mxu0 %v1147
    %1149 = vmatprep.subr.mxu0 0.0
    %v1150 = vand.u32 %v976, 4294901760
    %v1151 = vsub.f32 %v976, %v1150
    %v1152 = vand.u32 %v1151, 4294901760
    %v1153 = vsub.f32 %v1151, %v1152
    %v1154 = vand.u32 %v1153, 4294901760
    %1155 = vmatpush1.msra.mxu0 %v1154
    %1156 = vmatprep.subr.mxu0 0.0
    %v1157 = vand.u32 %v977, 4294901760
    %v1158 = vsub.f32 %v977, %v1157
    %v1159 = vand.u32 %v1158, 4294901760
    %v1160 = vsub.f32 %v1158, %v1159
    %v1161 = vand.u32 %v1160, 4294901760
    %1162 = vmatpush1.msra.mxu0 %v1161
    %1163 = vmatprep.subr.mxu0 0.0
    %v1164 = vand.u32 %v978, 4294901760
    %v1165 = vsub.f32 %v978, %v1164
    %v1166 = vand.u32 %v1165, 4294901760
    %v1167 = vsub.f32 %v1165, %v1166
    %v1168 = vand.u32 %v1167, 4294901760
    %1169 = vmatpush1.msra.mxu0 %v1168
    %1170 = vmatprep.subr.mxu0 0.0
    %v1171 = vand.u32 %v979, 4294901760
    %v1172 = vsub.f32 %v979, %v1171
    %v1173 = vand.u32 %v1172, 4294901760
    %v1174 = vsub.f32 %v1172, %v1173
    %v1175 = vand.u32 %v1174, 4294901760
    %1176 = vmatpush1.msra.mxu0 %v1175
    %1177 = vmatprep.subr.mxu0 0.0
    %v1178 = vand.u32 %v980, 4294901760
    %v1179 = vsub.f32 %v980, %v1178
    %v1180 = vand.u32 %v1179, 4294901760
    %v1181 = vsub.f32 %v1179, %v1180
    %v1182 = vand.u32 %v1181, 4294901760
    %1183 = vmatpush1.msra.mxu0 %v1182
    %1184 = vmatprep.subr.mxu0 0.0
    %1185 = vmatpush1.msra.mxu0 0.0
    %1186 = vmatprep.subr.mxu0 0.0
    %1187 = vmatpush1.msra.mxu0 0.0
    %1188 = vmatprep.subr.mxu0 0.0
    %1189 = vmatpush1.msra.mxu0 0.0
    %1190 = vmatprep.subr.mxu0 0.0
    %1191 = vmatpush1.msra.mxu0 0.0
    %1192 = vmatprep.subr.mxu0 0.0
    %1193 = vmatpush1.msra.mxu0 0.0
    %1194 = vmatprep.subr.mxu0 0.0
    %1195 = vmatpush1.msra.mxu0 0.0
    %1196 = vmatprep.subr.mxu0 0.0
    %1197 = vmatpush1.msra.mxu0 0.0
    %1198 = vmatprep.subr.mxu0 0.0
    %1199 = vmatpush1.msra.mxu0 0.0
    %1200 = vmatprep.subr.mxu0 0.0
    %1201 = vmatpush1.msra.mxu0 0.0
    %1202 = vmatprep.subr.mxu0 0.0
    %1203 = vmatpush1.msra.mxu0 0.0
    %1204 = vmatprep.subr.mxu0 0.0
    %1205 = vmatpush1.msra.mxu0 0.0
    %1206 = vmatprep.subr.mxu0 0.0
    %1207 = vmatpush1.msra.mxu0 0.0
    %1208 = vmatprep.subr.mxu0 0.0
    %1209 = vmatpush1.msra.mxu0 0.0
    %1210 = vmatprep.subr.mxu0 0.0
    %1211 = vmatpush1.msra.mxu0 0.0
    %1212 = vmatprep.subr.mxu0 0.0
    %1213 = vmatpush1.msra.mxu0 0.0
    %1214 = vmatprep.subr.mxu0 0.0
    %1215 = vmatpush1.msra.mxu0 0.0
    %1216 = vmatprep.mubr.f32.mxu0 0.0
    %v1217 = vand.u32 %v964, 4294901760
    %1218 = vmatmul.mubr.f32.gmra.mrb[0].mxu0 %v1217
    %v1219 = vpop.f32.mrb[0].mxu0
    %v1220 = vadd.f32 %v1069, %v1219
    %v1221 = vpop.f32.mrb[0].mxu0
    %1222 = vdwg.mxu0
    %1223 = vmatprep.subr.mxu0 0.0
    %v1224 = vand.u32 %v965, 4294901760
    %v1225 = vsub.f32 %v965, %v1224
    %1226 = vmatpush1.msra.mxu0 %v1225
    %1227 = vmatprep.subr.mxu0 0.0
    %v1228 = vand.u32 %v966, 4294901760
    %v1229 = vsub.f32 %v966, %v1228
    %1230 = vmatpush1.msra.mxu0 %v1229
    %1231 = vmatprep.subr.mxu0 0.0
    %v1232 = vand.u32 %v967, 4294901760
    %v1233 = vsub.f32 %v967, %v1232
    %1234 = vmatpush1.msra.mxu0 %v1233
    %1235 = vmatprep.subr.mxu0 0.0
    %v1236 = vand.u32 %v968, 4294901760
    %v1237 = vsub.f32 %v968, %v1236
    %1238 = vmatpush1.msra.mxu0 %v1237
    %1239 = vmatprep.subr.mxu0 0.0
    %v1240 = vand.u32 %v969, 4294901760
    %v1241 = vsub.f32 %v969, %v1240
    %1242 = vmatpush1.msra.mxu0 %v1241
    %1243 = vmatprep.subr.mxu0 0.0
    %v1244 = vand.u32 %v970, 4294901760
    %v1245 = vsub.f32 %v970, %v1244
    %1246 = vmatpush1.msra.mxu0 %v1245
    %1247 = vmatprep.subr.mxu0 0.0
    %v1248 = vand.u32 %v971, 4294901760
    %v1249 = vsub.f32 %v971, %v1248
    %1250 = vmatpush1.msra.mxu0 %v1249
    %1251 = vmatprep.subr.mxu0 0.0
    %v1252 = vand.u32 %v972, 4294901760
    %v1253 = vsub.f32 %v972, %v1252
    %1254 = vmatpush1.msra.mxu0 %v1253
    %1255 = vmatprep.subr.mxu0 0.0
    %v1256 = vand.u32 %v973, 4294901760
    %v1257 = vsub.f32 %v973, %v1256
    %1258 = vmatpush1.msra.mxu0 %v1257
    %1259 = vmatprep.subr.mxu0 0.0
    %v1260 = vand.u32 %v974, 4294901760
    %v1261 = vsub.f32 %v974, %v1260
    %1262 = vmatpush1.msra.mxu0 %v1261
    %1263 = vmatprep.subr.mxu0 0.0
    %v1264 = vand.u32 %v975, 4294901760
    %v1265 = vsub.f32 %v975, %v1264
    %1266 = vmatpush1.msra.mxu0 %v1265
    %1267 = vmatprep.subr.mxu0 0.0
    %v1268 = vand.u32 %v976, 4294901760
    %v1269 = vsub.f32 %v976, %v1268
    %1270 = vmatpush1.msra.mxu0 %v1269
    %1271 = vmatprep.subr.mxu0 0.0
    %v1272 = vand.u32 %v977, 4294901760
    %v1273 = vsub.f32 %v977, %v1272
    %1274 = vmatpush1.msra.mxu0 %v1273
    %1275 = vmatprep.subr.mxu0 0.0
    %v1276 = vand.u32 %v978, 4294901760
    %v1277 = vsub.f32 %v978, %v1276
    %1278 = vmatpush1.msra.mxu0 %v1277
    %1279 = vmatprep.subr.mxu0 0.0
    %v1280 = vand.u32 %v979, 4294901760
    %v1281 = vsub.f32 %v979, %v1280
    %1282 = vmatpush1.msra.mxu0 %v1281
    %1283 = vmatprep.subr.mxu0 0.0
    %v1284 = vand.u32 %v980, 4294901760
    %v1285 = vsub.f32 %v980, %v1284
    %1286 = vmatpush1.msra.mxu0 %v1285
    %1287 = vmatprep.subr.mxu0 0.0
    %1288 = vmatpush1.msra.mxu0 0.0
    %1289 = vmatprep.subr.mxu0 0.0
    %1290 = vmatpush1.msra.mxu0 0.0
    %1291 = vmatprep.subr.mxu0 0.0
    %1292 = vmatpush1.msra.mxu0 0.0
    %1293 = vmatprep.subr.mxu0 0.0
    %1294 = vmatpush1.msra.mxu0 0.0
    %1295 = vmatprep.subr.mxu0 0.0
    %1296 = vmatpush1.msra.mxu0 0.0
    %1297 = vmatprep.subr.mxu0 0.0
    %1298 = vmatpush1.msra.mxu0 0.0
    %1299 = vmatprep.subr.mxu0 0.0
    %1300 = vmatpush1.msra.mxu0 0.0
    %1301 = vmatprep.subr.mxu0 0.0
    %1302 = vmatpush1.msra.mxu0 0.0
    %1303 = vmatprep.subr.mxu0 0.0
    %1304 = vmatpush1.msra.mxu0 0.0
    %1305 = vmatprep.subr.mxu0 0.0
    %1306 = vmatpush1.msra.mxu0 0.0
    %1307 = vmatprep.subr.mxu0 0.0
    %1308 = vmatpush1.msra.mxu0 0.0
    %1309 = vmatprep.subr.mxu0 0.0
    %1310 = vmatpush1.msra.mxu0 0.0
    %1311 = vmatprep.subr.mxu0 0.0
    %1312 = vmatpush1.msra.mxu0 0.0
    %1313 = vmatprep.subr.mxu0 0.0
    %1314 = vmatpush1.msra.mxu0 0.0
    %1315 = vmatprep.subr.mxu0 0.0
    %1316 = vmatpush1.msra.mxu0 0.0
    %1317 = vmatprep.subr.mxu0 0.0
    %1318 = vmatpush1.msra.mxu0 0.0
    %1319 = vmatprep.mubr.f32.mxu0 0.0
    %v1320 = vand.u32 %v964, 4294901760
    %v1321 = vsub.f32 %v964, %v1320
    %1322 = vmatmul.mubr.f32.gmra.mrb[0].mxu0 %v1321
    %v1323 = vpop.f32.mrb[0].mxu0
    %v1324 = vadd.f32 %v1220, %v1323
    %v1325 = vpop.f32.mrb[0].mxu0
    %1326 = vdwg.mxu0
    %1327 = vmatprep.subr.mxu0 0.0
    %v1328 = vand.u32 %v965, 4294901760
    %1329 = vmatpush1.msra.mxu0 %v1328
    %1330 = vmatprep.subr.mxu0 0.0
    %v1331 = vand.u32 %v966, 4294901760
    %1332 = vmatpush1.msra.mxu0 %v1331
    %1333 = vmatprep.subr.mxu0 0.0
    %v1334 = vand.u32 %v967, 4294901760
    %1335 = vmatpush1.msra.mxu0 %v1334
    %1336 = vmatprep.subr.mxu0 0.0
    %v1337 = vand.u32 %v968, 4294901760
    %1338 = vmatpush1.msra.mxu0 %v1337
    %1339 = vmatprep.subr.mxu0 0.0
    %v1340 = vand.u32 %v969, 4294901760
    %1341 = vmatpush1.msra.mxu0 %v1340
    %1342 = vmatprep.subr.mxu0 0.0
    %v1343 = vand.u32 %v970, 4294901760
    %1344 = vmatpush1.msra.mxu0 %v1343
    %1345 = vmatprep.subr.mxu0 0.0
    %v1346 = vand.u32 %v971, 4294901760
    %1347 = vmatpush1.msra.mxu0 %v1346
    %1348 = vmatprep.subr.mxu0 0.0
    %v1349 = vand.u32 %v972, 4294901760
    %1350 = vmatpush1.msra.mxu0 %v1349
    %1351 = vmatprep.subr.mxu0 0.0
    %v1352 = vand.u32 %v973, 4294901760
    %1353 = vmatpush1.msra.mxu0 %v1352
    %1354 = vmatprep.subr.mxu0 0.0
    %v1355 = vand.u32 %v974, 4294901760
    %1356 = vmatpush1.msra.mxu0 %v1355
    %1357 = vmatprep.subr.mxu0 0.0
    %v1358 = vand.u32 %v975, 4294901760
    %1359 = vmatpush1.msra.mxu0 %v1358
    %1360 = vmatprep.subr.mxu0 0.0
    %v1361 = vand.u32 %v976, 4294901760
    %1362 = vmatpush1.msra.mxu0 %v1361
    %1363 = vmatprep.subr.mxu0 0.0
    %v1364 = vand.u32 %v977, 4294901760
    %1365 = vmatpush1.msra.mxu0 %v1364
    %1366 = vmatprep.subr.mxu0 0.0
    %v1367 = vand.u32 %v978, 4294901760
    %1368 = vmatpush1.msra.mxu0 %v1367
    %1369 = vmatprep.subr.mxu0 0.0
    %v1370 = vand.u32 %v979, 4294901760
    %1371 = vmatpush1.msra.mxu0 %v1370
    %1372 = vmatprep.subr.mxu0 0.0
    %v1373 = vand.u32 %v980, 4294901760
    %1374 = vmatpush1.msra.mxu0 %v1373
    %1375 = vmatprep.subr.mxu0 0.0
    %1376 = vmatpush1.msra.mxu0 0.0
    %1377 = vmatprep.subr.mxu0 0.0
    %1378 = vmatpush1.msra.mxu0 0.0
    %1379 = vmatprep.subr.mxu0 0.0
    %1380 = vmatpush1.msra.mxu0 0.0
    %1381 = vmatprep.subr.mxu0 0.0
    %1382 = vmatpush1.msra.mxu0 0.0
    %1383 = vmatprep.subr.mxu0 0.0
    %1384 = vmatpush1.msra.mxu0 0.0
    %1385 = vmatprep.subr.mxu0 0.0
    %1386 = vmatpush1.msra.mxu0 0.0
    %1387 = vmatprep.subr.mxu0 0.0
    %1388 = vmatpush1.msra.mxu0 0.0
    %1389 = vmatprep.subr.mxu0 0.0
    %1390 = vmatpush1.msra.mxu0 0.0
    %1391 = vmatprep.subr.mxu0 0.0
    %1392 = vmatpush1.msra.mxu0 0.0
    %1393 = vmatprep.subr.mxu0 0.0
    %1394 = vmatpush1.msra.mxu0 0.0
    %1395 = vmatprep.subr.mxu0 0.0
    %1396 = vmatpush1.msra.mxu0 0.0
    %1397 = vmatprep.subr.mxu0 0.0
    %1398 = vmatpush1.msra.mxu0 0.0
    %1399 = vmatprep.subr.mxu0 0.0
    %1400 = vmatpush1.msra.mxu0 0.0
    %1401 = vmatprep.subr.mxu0 0.0
    %1402 = vmatpush1.msra.mxu0 0.0
    %1403 = vmatprep.subr.mxu0 0.0
    %1404 = vmatpush1.msra.mxu0 0.0
    %1405 = vmatprep.subr.mxu0 0.0
    %1406 = vmatpush1.msra.mxu0 0.0
    %1407 = vmatprep.mubr.f32.mxu0 0.0
    %v1408 = vand.u32 %v964, 4294901760
    %v1409 = vsub.f32 %v964, %v1408
    %v1410 = vand.u32 %v1409, 4294901760
    %1411 = vmatmul.mubr.f32.gmra.mrb[0].mxu0 %v1410
    %v1412 = vpop.f32.mrb[0].mxu0
    %v1413 = vadd.f32 %v1324, %v1412
    %v1414 = vpop.f32.mrb[0].mxu0
    %1415 = vdwg.mxu0
    %1416 = vmatprep.subr.mxu0 0.0
    %v1417 = vand.u32 %v965, 4294901760
    %v1418 = vsub.f32 %v965, %v1417
    %v1419 = vand.u32 %v1418, 4294901760
    %1420 = vmatpush1.msra.mxu0 %v1419
    %1421 = vmatprep.subr.mxu0 0.0
    %v1422 = vand.u32 %v966, 4294901760
    %v1423 = vsub.f32 %v966, %v1422
    %v1424 = vand.u32 %v1423, 4294901760
    %1425 = vmatpush1.msra.mxu0 %v1424
    %1426 = vmatprep.subr.mxu0 0.0
    %v1427 = vand.u32 %v967, 4294901760
    %v1428 = vsub.f32 %v967, %v1427
    %v1429 = vand.u32 %v1428, 4294901760
    %1430 = vmatpush1.msra.mxu0 %v1429
    %1431 = vmatprep.subr.mxu0 0.0
    %v1432 = vand.u32 %v968, 4294901760
    %v1433 = vsub.f32 %v968, %v1432
    %v1434 = vand.u32 %v1433, 4294901760
    %1435 = vmatpush1.msra.mxu0 %v1434
    %1436 = vmatprep.subr.mxu0 0.0
    %v1437 = vand.u32 %v969, 4294901760
    %v1438 = vsub.f32 %v969, %v1437
    %v1439 = vand.u32 %v1438, 4294901760
    %1440 = vmatpush1.msra.mxu0 %v1439
    %1441 = vmatprep.subr.mxu0 0.0
    %v1442 = vand.u32 %v970, 4294901760
    %v1443 = vsub.f32 %v970, %v1442
    %v1444 = vand.u32 %v1443, 4294901760
    %1445 = vmatpush1.msra.mxu0 %v1444
    %1446 = vmatprep.subr.mxu0 0.0
    %v1447 = vand.u32 %v971, 4294901760
    %v1448 = vsub.f32 %v971, %v1447
    %v1449 = vand.u32 %v1448, 4294901760
    %1450 = vmatpush1.msra.mxu0 %v1449
    %1451 = vmatprep.subr.mxu0 0.0
    %v1452 = vand.u32 %v972, 4294901760
    %v1453 = vsub.f32 %v972, %v1452
    %v1454 = vand.u32 %v1453, 4294901760
    %1455 = vmatpush1.msra.mxu0 %v1454
    %1456 = vmatprep.subr.mxu0 0.0
    %v1457 = vand.u32 %v973, 4294901760
    %v1458 = vsub.f32 %v973, %v1457
    %v1459 = vand.u32 %v1458, 4294901760
    %1460 = vmatpush1.msra.mxu0 %v1459
    %1461 = vmatprep.subr.mxu0 0.0
    %v1462 = vand.u32 %v974, 4294901760
    %v1463 = vsub.f32 %v974, %v1462
    %v1464 = vand.u32 %v1463, 4294901760
    %1465 = vmatpush1.msra.mxu0 %v1464
    %1466 = vmatprep.subr.mxu0 0.0
    %v1467 = vand.u32 %v975, 4294901760
    %v1468 = vsub.f32 %v975, %v1467
    %v1469 = vand.u32 %v1468, 4294901760
    %1470 = vmatpush1.msra.mxu0 %v1469
    %1471 = vmatprep.subr.mxu0 0.0
    %v1472 = vand.u32 %v976, 4294901760
    %v1473 = vsub.f32 %v976, %v1472
    %v1474 = vand.u32 %v1473, 4294901760
    %1475 = vmatpush1.msra.mxu0 %v1474
    %1476 = vmatprep.subr.mxu0 0.0
    %v1477 = vand.u32 %v977, 4294901760
    %v1478 = vsub.f32 %v977, %v1477
    %v1479 = vand.u32 %v1478, 4294901760
    %1480 = vmatpush1.msra.mxu0 %v1479
    %1481 = vmatprep.subr.mxu0 0.0
    %v1482 = vand.u32 %v978, 4294901760
    %v1483 = vsub.f32 %v978, %v1482
    %v1484 = vand.u32 %v1483, 4294901760
    %1485 = vmatpush1.msra.mxu0 %v1484
    %1486 = vmatprep.subr.mxu0 0.0
    %v1487 = vand.u32 %v979, 4294901760
    %v1488 = vsub.f32 %v979, %v1487
    %v1489 = vand.u32 %v1488, 4294901760
    %1490 = vmatpush1.msra.mxu0 %v1489
    %1491 = vmatprep.subr.mxu0 0.0
    %v1492 = vand.u32 %v980, 4294901760
    %v1493 = vsub.f32 %v980, %v1492
    %v1494 = vand.u32 %v1493, 4294901760
    %1495 = vmatpush1.msra.mxu0 %v1494
    %1496 = vmatprep.subr.mxu0 0.0
    %1497 = vmatpush1.msra.mxu0 0.0
    %1498 = vmatprep.subr.mxu0 0.0
    %1499 = vmatpush1.msra.mxu0 0.0
    %1500 = vmatprep.subr.mxu0 0.0
    %1501 = vmatpush1.msra.mxu0 0.0
    %1502 = vmatprep.subr.mxu0 0.0
    %1503 = vmatpush1.msra.mxu0 0.0
    %1504 = vmatprep.subr.mxu0 0.0
    %1505 = vmatpush1.msra.mxu0 0.0
    %1506 = vmatprep.subr.mxu0 0.0
    %1507 = vmatpush1.msra.mxu0 0.0
    %1508 = vmatprep.subr.mxu0 0.0
    %1509 = vmatpush1.msra.mxu0 0.0
    %1510 = vmatprep.subr.mxu0 0.0
    %1511 = vmatpush1.msra.mxu0 0.0
    %1512 = vmatprep.subr.mxu0 0.0
    %1513 = vmatpush1.msra.mxu0 0.0
    %1514 = vmatprep.subr.mxu0 0.0
    %1515 = vmatpush1.msra.mxu0 0.0
    %1516 = vmatprep.subr.mxu0 0.0
    %1517 = vmatpush1.msra.mxu0 0.0
    %1518 = vmatprep.subr.mxu0 0.0
    %1519 = vmatpush1.msra.mxu0 0.0
    %1520 = vmatprep.subr.mxu0 0.0
    %1521 = vmatpush1.msra.mxu0 0.0
    %1522 = vmatprep.subr.mxu0 0.0
    %1523 = vmatpush1.msra.mxu0 0.0
    %1524 = vmatprep.subr.mxu0 0.0
    %1525 = vmatpush1.msra.mxu0 0.0
    %1526 = vmatprep.subr.mxu0 0.0
    %1527 = vmatpush1.msra.mxu0 0.0
    %1528 = vmatprep.mubr.f32.mxu0 0.0
    %v1529 = vand.u32 %v964, 4294901760
    %1530 = vmatmul.mubr.f32.gmra.mrb[0].mxu0 %v1529
    %v1531 = vpop.f32.mrb[0].mxu0
    %v1532 = vadd.f32 %v1413, %v1531
    %v1533 = vpop.f32.mrb[0].mxu0
    %1534 = vdwg.mxu0
    %1535 = vmatprep.subr.mxu0 0.0
    %v1536 = vand.u32 %v965, 4294901760
    %1537 = vmatpush1.msra.mxu0 %v1536
    %1538 = vmatprep.subr.mxu0 0.0
    %v1539 = vand.u32 %v966, 4294901760
    %1540 = vmatpush1.msra.mxu0 %v1539
    %1541 = vmatprep.subr.mxu0 0.0
    %v1542 = vand.u32 %v967, 4294901760
    %1543 = vmatpush1.msra.mxu0 %v1542
    %1544 = vmatprep.subr.mxu0 0.0
    %v1545 = vand.u32 %v968, 4294901760
    %1546 = vmatpush1.msra.mxu0 %v1545
    %1547 = vmatprep.subr.mxu0 0.0
    %v1548 = vand.u32 %v969, 4294901760
    %1549 = vmatpush1.msra.mxu0 %v1548
    %1550 = vmatprep.subr.mxu0 0.0
    %v1551 = vand.u32 %v970, 4294901760
    %1552 = vmatpush1.msra.mxu0 %v1551
    %1553 = vmatprep.subr.mxu0 0.0
    %v1554 = vand.u32 %v971, 4294901760
    %1555 = vmatpush1.msra.mxu0 %v1554
    %1556 = vmatprep.subr.mxu0 0.0
    %v1557 = vand.u32 %v972, 4294901760
    %1558 = vmatpush1.msra.mxu0 %v1557
    %1559 = vmatprep.subr.mxu0 0.0
    %v1560 = vand.u32 %v973, 4294901760
    %1561 = vmatpush1.msra.mxu0 %v1560
    %1562 = vmatprep.subr.mxu0 0.0
    %v1563 = vand.u32 %v974, 4294901760
    %1564 = vmatpush1.msra.mxu0 %v1563
    %1565 = vmatprep.subr.mxu0 0.0
    %v1566 = vand.u32 %v975, 4294901760
    %1567 = vmatpush1.msra.mxu0 %v1566
    %1568 = vmatprep.subr.mxu0 0.0
    %v1569 = vand.u32 %v976, 4294901760
    %1570 = vmatpush1.msra.mxu0 %v1569
    %1571 = vmatprep.subr.mxu0 0.0
    %v1572 = vand.u32 %v977, 4294901760
    %1573 = vmatpush1.msra.mxu0 %v1572
    %1574 = vmatprep.subr.mxu0 0.0
    %v1575 = vand.u32 %v978, 4294901760
    %1576 = vmatpush1.msra.mxu0 %v1575
    %1577 = vmatprep.subr.mxu0 0.0
    %v1578 = vand.u32 %v979, 4294901760
    %1579 = vmatpush1.msra.mxu0 %v1578
    %1580 = vmatprep.subr.mxu0 0.0
    %v1581 = vand.u32 %v980, 4294901760
    %1582 = vmatpush1.msra.mxu0 %v1581
    %1583 = vmatprep.subr.mxu0 0.0
    %1584 = vmatpush1.msra.mxu0 0.0
    %1585 = vmatprep.subr.mxu0 0.0
    %1586 = vmatpush1.msra.mxu0 0.0
    %1587 = vmatprep.subr.mxu0 0.0
    %1588 = vmatpush1.msra.mxu0 0.0
    %1589 = vmatprep.subr.mxu0 0.0
    %1590 = vmatpush1.msra.mxu0 0.0
    %1591 = vmatprep.subr.mxu0 0.0
    %1592 = vmatpush1.msra.mxu0 0.0
    %1593 = vmatprep.subr.mxu0 0.0
    %1594 = vmatpush1.msra.mxu0 0.0
    %1595 = vmatprep.subr.mxu0 0.0
    %1596 = vmatpush1.msra.mxu0 0.0
    %1597 = vmatprep.subr.mxu0 0.0
    %1598 = vmatpush1.msra.mxu0 0.0
    %1599 = vmatprep.subr.mxu0 0.0
    %1600 = vmatpush1.msra.mxu0 0.0
    %1601 = vmatprep.subr.mxu0 0.0
    %1602 = vmatpush1.msra.mxu0 0.0
    %1603 = vmatprep.subr.mxu0 0.0
    %1604 = vmatpush1.msra.mxu0 0.0
    %1605 = vmatprep.subr.mxu0 0.0
    %1606 = vmatpush1.msra.mxu0 0.0
    %1607 = vmatprep.subr.mxu0 0.0
    %1608 = vmatpush1.msra.mxu0 0.0
    %1609 = vmatprep.subr.mxu0 0.0
    %1610 = vmatpush1.msra.mxu0 0.0
    %1611 = vmatprep.subr.mxu0 0.0
    %1612 = vmatpush1.msra.mxu0 0.0
    %1613 = vmatprep.subr.mxu0 0.0
    %1614 = vmatpush1.msra.mxu0 0.0
    %1615 = vmatprep.mubr.f32.mxu0 0.0
    %v1616 = vand.u32 %v964, 4294901760
    %1617 = vmatmul.mubr.f32.gmra.mrb[0].mxu0 %v1616
    %v1618 = vpop.f32.mrb[0].mxu0
    %v1619 = vadd.f32 %v1532, %v1618
    %v1620 = vpop.f32.mrb[0].mxu0
    %1621 = vdwg.mxu0
    %v1622 = vmul.f32 %v1619, 0.03125
    %v1623 = vsub.f32 %v964, %v1622
    %v1624 = vmul.f32 %v1623, %v1623
    %1625 = vmatprep.subr.mxu0 0.0
    %v1626 = vand.u32 %v965, 4294901760
    %1627 = vmatpush1.msra.mxu0 %v1626
    %1628 = vmatprep.subr.mxu0 0.0
    %v1629 = vand.u32 %v966, 4294901760
    %1630 = vmatpush1.msra.mxu0 %v1629
    %1631 = vmatprep.subr.mxu0 0.0
    %v1632 = vand.u32 %v967, 4294901760
    %1633 = vmatpush1.msra.mxu0 %v1632
    %1634 = vmatprep.subr.mxu0 0.0
    %v1635 = vand.u32 %v968, 4294901760
    %1636 = vmatpush1.msra.mxu0 %v1635
    %1637 = vmatprep.subr.mxu0 0.0
    %v1638 = vand.u32 %v969, 4294901760
    %1639 = vmatpush1.msra.mxu0 %v1638
    %1640 = vmatprep.subr.mxu0 0.0
    %v1641 = vand.u32 %v970, 4294901760
    %1642 = vmatpush1.msra.mxu0 %v1641
    %1643 = vmatprep.subr.mxu0 0.0
    %v1644 = vand.u32 %v971, 4294901760
    %1645 = vmatpush1.msra.mxu0 %v1644
    %1646 = vmatprep.subr.mxu0 0.0
    %v1647 = vand.u32 %v972, 4294901760
    %1648 = vmatpush1.msra.mxu0 %v1647
    %1649 = vmatprep.subr.mxu0 0.0
    %v1650 = vand.u32 %v973, 4294901760
    %1651 = vmatpush1.msra.mxu0 %v1650
    %1652 = vmatprep.subr.mxu0 0.0
    %v1653 = vand.u32 %v974, 4294901760
    %1654 = vmatpush1.msra.mxu0 %v1653
    %1655 = vmatprep.subr.mxu0 0.0
    %v1656 = vand.u32 %v975, 4294901760
    %1657 = vmatpush1.msra.mxu0 %v1656
    %1658 = vmatprep.subr.mxu0 0.0
    %v1659 = vand.u32 %v976, 4294901760
    %1660 = vmatpush1.msra.mxu0 %v1659
    %1661 = vmatprep.subr.mxu0 0.0
    %v1662 = vand.u32 %v977, 4294901760
    %1663 = vmatpush1.msra.mxu0 %v1662
    %1664 = vmatprep.subr.mxu0 0.0
    %v1665 = vand.u32 %v978, 4294901760
    %1666 = vmatpush1.msra.mxu0 %v1665
    %1667 = vmatprep.subr.mxu0 0.0
    %v1668 = vand.u32 %v979, 4294901760
    %1669 = vmatpush1.msra.mxu0 %v1668
    %1670 = vmatprep.subr.mxu0 0.0
    %v1671 = vand.u32 %v980, 4294901760
    %1672 = vmatpush1.msra.mxu0 %v1671
    %1673 = vmatprep.subr.mxu0 0.0
    %1674 = vmatpush1.msra.mxu0 0.0
    %1675 = vmatprep.subr.mxu0 0.0
    %1676 = vmatpush1.msra.mxu0 0.0
    %1677 = vmatprep.subr.mxu0 0.0
    %1678 = vmatpush1.msra.mxu0 0.0
    %1679 = vmatprep.subr.mxu0 0.0
    %1680 = vmatpush1.msra.mxu0 0.0
    %1681 = vmatprep.subr.mxu0 0.0
    %1682 = vmatpush1.msra.mxu0 0.0
    %1683 = vmatprep.subr.mxu0 0.0
    %1684 = vmatpush1.msra.mxu0 0.0
    %1685 = vmatprep.subr.mxu0 0.0
    %1686 = vmatpush1.msra.mxu0 0.0
    %1687 = vmatprep.subr.mxu0 0.0
    %1688 = vmatpush1.msra.mxu0 0.0
    %1689 = vmatprep.subr.mxu0 0.0
    %1690 = vmatpush1.msra.mxu0 0.0
    %1691 = vmatprep.subr.mxu0 0.0
    %1692 = vmatpush1.msra.mxu0 0.0
    %1693 = vmatprep.subr.mxu0 0.0
    %1694 = vmatpush1.msra.mxu0 0.0
    %1695 = vmatprep.subr.mxu0 0.0
    %1696 = vmatpush1.msra.mxu0 0.0
    %1697 = vmatprep.subr.mxu0 0.0
    %1698 = vmatpush1.msra.mxu0 0.0
    %1699 = vmatprep.subr.mxu0 0.0
    %1700 = vmatpush1.msra.mxu0 0.0
    %1701 = vmatprep.subr.mxu0 0.0
    %1702 = vmatpush1.msra.mxu0 0.0
    %1703 = vmatprep.subr.mxu0 0.0
    %1704 = vmatpush1.msra.mxu0 0.0
    %1705 = vmatprep.mubr.f32.mxu0 0.0
    %v1706 = vand.u32 %v1624, 4294901760
    %v1707 = vsub.f32 %v1624, %v1706
    %v1708 = vand.u32 %v1707, 4294901760
    %v1709 = vsub.f32 %v1707, %v1708
    %v1710 = vand.u32 %v1709, 4294901760
    %1711 = vmatmul.mubr.f32.gmra.mrb[0].mxu0 %v1710
    %v1712 = vpop.f32.mrb[0].mxu0
    %v1713 = vadd.f32 0.0, %v1712
    %v1714 = vpop.f32.mrb[0].mxu0
    %1715 = vdwg.mxu0
    %1716 = vmatprep.subr.mxu0 0.0
    %v1717 = vand.u32 %v965, 4294901760
    %v1718 = vsub.f32 %v965, %v1717
    %v1719 = vand.u32 %v1718, 4294901760
    %v1720 = vsub.f32 %v1718, %v1719
    %v1721 = vand.u32 %v1720, 4294901760
    %1722 = vmatpush1.msra.mxu0 %v1721
    %1723 = vmatprep.subr.mxu0 0.0
    %v1724 = vand.u32 %v966, 4294901760
    %v1725 = vsub.f32 %v966, %v1724
    %v1726 = vand.u32 %v1725, 4294901760
    %v1727 = vsub.f32 %v1725, %v1726
    %v1728 = vand.u32 %v1727, 4294901760
    %1729 = vmatpush1.msra.mxu0 %v1728
    %1730 = vmatprep.subr.mxu0 0.0
    %v1731 = vand.u32 %v967, 4294901760
    %v1732 = vsub.f32 %v967, %v1731
    %v1733 = vand.u32 %v1732, 4294901760
    %v1734 = vsub.f32 %v1732, %v1733
    %v1735 = vand.u32 %v1734, 4294901760
    %1736 = vmatpush1.msra.mxu0 %v1735
    %1737 = vmatprep.subr.mxu0 0.0
    %v1738 = vand.u32 %v968, 4294901760
    %v1739 = vsub.f32 %v968, %v1738
    %v1740 = vand.u32 %v1739, 4294901760
    %v1741 = vsub.f32 %v1739, %v1740
    %v1742 = vand.u32 %v1741, 4294901760
    %1743 = vmatpush1.msra.mxu0 %v1742
    %1744 = vmatprep.subr.mxu0 0.0
    %v1745 = vand.u32 %v969, 4294901760
    %v1746 = vsub.f32 %v969, %v1745
    %v1747 = vand.u32 %v1746, 4294901760
    %v1748 = vsub.f32 %v1746, %v1747
    %v1749 = vand.u32 %v1748, 4294901760
    %1750 = vmatpush1.msra.mxu0 %v1749
    %1751 = vmatprep.subr.mxu0 0.0
    %v1752 = vand.u32 %v970, 4294901760
    %v1753 = vsub.f32 %v970, %v1752
    %v1754 = vand.u32 %v1753, 4294901760
    %v1755 = vsub.f32 %v1753, %v1754
    %v1756 = vand.u32 %v1755, 4294901760
    %1757 = vmatpush1.msra.mxu0 %v1756
    %1758 = vmatprep.subr.mxu0 0.0
    %v1759 = vand.u32 %v971, 4294901760
    %v1760 = vsub.f32 %v971, %v1759
    %v1761 = vand.u32 %v1760, 4294901760
    %v1762 = vsub.f32 %v1760, %v1761
    %v1763 = vand.u32 %v1762, 4294901760
    %1764 = vmatpush1.msra.mxu0 %v1763
    %1765 = vmatprep.subr.mxu0 0.0
    %v1766 = vand.u32 %v972, 4294901760
    %v1767 = vsub.f32 %v972, %v1766
    %v1768 = vand.u32 %v1767, 4294901760
    %v1769 = vsub.f32 %v1767, %v1768
    %v1770 = vand.u32 %v1769, 4294901760
    %1771 = vmatpush1.msra.mxu0 %v1770
    %1772 = vmatprep.subr.mxu0 0.0
    %v1773 = vand.u32 %v973, 4294901760
    %v1774 = vsub.f32 %v973, %v1773
    %v1775 = vand.u32 %v1774, 4294901760
    %v1776 = vsub.f32 %v1774, %v1775
    %v1777 = vand.u32 %v1776, 4294901760
    %1778 = vmatpush1.msra.mxu0 %v1777
    %1779 = vmatprep.subr.mxu0 0.0
    %v1780 = vand.u32 %v974, 4294901760
    %v1781 = vsub.f32 %v974, %v1780
    %v1782 = vand.u32 %v1781, 4294901760
    %v1783 = vsub.f32 %v1781, %v1782
    %v1784 = vand.u32 %v1783, 4294901760
    %1785 = vmatpush1.msra.mxu0 %v1784
    %1786 = vmatprep.subr.mxu0 0.0
    %v1787 = vand.u32 %v975, 4294901760
    %v1788 = vsub.f32 %v975, %v1787
    %v1789 = vand.u32 %v1788, 4294901760
    %v1790 = vsub.f32 %v1788, %v1789
    %v1791 = vand.u32 %v1790, 4294901760
    %1792 = vmatpush1.msra.mxu0 %v1791
    %1793 = vmatprep.subr.mxu0 0.0
    %v1794 = vand.u32 %v976, 4294901760
    %v1795 = vsub.f32 %v976, %v1794
    %v1796 = vand.u32 %v1795, 4294901760
    %v1797 = vsub.f32 %v1795, %v1796
    %v1798 = vand.u32 %v1797, 4294901760
    %1799 = vmatpush1.msra.mxu0 %v1798
    %1800 = vmatprep.subr.mxu0 0.0
    %v1801 = vand.u32 %v977, 4294901760
    %v1802 = vsub.f32 %v977, %v1801
    %v1803 = vand.u32 %v1802, 4294901760
    %v1804 = vsub.f32 %v1802, %v1803
    %v1805 = vand.u32 %v1804, 4294901760
    %1806 = vmatpush1.msra.mxu0 %v1805
    %1807 = vmatprep.subr.mxu0 0.0
    %v1808 = vand.u32 %v978, 4294901760
    %v1809 = vsub.f32 %v978, %v1808
    %v1810 = vand.u32 %v1809, 4294901760
    %v1811 = vsub.f32 %v1809, %v1810
    %v1812 = vand.u32 %v1811, 4294901760
    %1813 = vmatpush1.msra.mxu0 %v1812
    %1814 = vmatprep.subr.mxu0 0.0
    %v1815 = vand.u32 %v979, 4294901760
    %v1816 = vsub.f32 %v979, %v1815
    %v1817 = vand.u32 %v1816, 4294901760
    %v1818 = vsub.f32 %v1816, %v1817
    %v1819 = vand.u32 %v1818, 4294901760
    %1820 = vmatpush1.msra.mxu0 %v1819
    %1821 = vmatprep.subr.mxu0 0.0
    %v1822 = vand.u32 %v980, 4294901760
    %v1823 = vsub.f32 %v980, %v1822
    %v1824 = vand.u32 %v1823, 4294901760
    %v1825 = vsub.f32 %v1823, %v1824
    %v1826 = vand.u32 %v1825, 4294901760
    %1827 = vmatpush1.msra.mxu0 %v1826
    %1828 = vmatprep.subr.mxu0 0.0
    %1829 = vmatpush1.msra.mxu0 0.0
    %1830 = vmatprep.subr.mxu0 0.0
    %1831 = vmatpush1.msra.mxu0 0.0
    %1832 = vmatprep.subr.mxu0 0.0
    %1833 = vmatpush1.msra.mxu0 0.0
    %1834 = vmatprep.subr.mxu0 0.0
    %1835 = vmatpush1.msra.mxu0 0.0
    %1836 = vmatprep.subr.mxu0 0.0
    %1837 = vmatpush1.msra.mxu0 0.0
    %1838 = vmatprep.subr.mxu0 0.0
    %1839 = vmatpush1.msra.mxu0 0.0
    %1840 = vmatprep.subr.mxu0 0.0
    %1841 = vmatpush1.msra.mxu0 0.0
    %1842 = vmatprep.subr.mxu0 0.0
    %1843 = vmatpush1.msra.mxu0 0.0
    %1844 = vmatprep.subr.mxu0 0.0
    %1845 = vmatpush1.msra.mxu0 0.0
    %1846 = vmatprep.subr.mxu0 0.0
    %1847 = vmatpush1.msra.mxu0 0.0
    %1848 = vmatprep.subr.mxu0 0.0
    %1849 = vmatpush1.msra.mxu0 0.0
    %1850 = vmatprep.subr.mxu0 0.0
    %1851 = vmatpush1.msra.mxu0 0.0
    %1852 = vmatprep.subr.mxu0 0.0
    %1853 = vmatpush1.msra.mxu0 0.0
    %1854 = vmatprep.subr.mxu0 0.0
    %1855 = vmatpush1.msra.mxu0 0.0
    %1856 = vmatprep.subr.mxu0 0.0
    %1857 = vmatpush1.msra.mxu0 0.0
    %1858 = vmatprep.subr.mxu0 0.0
    %1859 = vmatpush1.msra.mxu0 0.0
    %1860 = vmatprep.mubr.f32.mxu0 0.0
    %v1861 = vand.u32 %v1624, 4294901760
    %1862 = vmatmul.mubr.f32.gmra.mrb[0].mxu0 %v1861
    %v1863 = vpop.f32.mrb[0].mxu0
    %v1864 = vadd.f32 %v1713, %v1863
    %v1865 = vpop.f32.mrb[0].mxu0
    %1866 = vdwg.mxu0
    %1867 = vmatprep.subr.mxu0 0.0
    %v1868 = vand.u32 %v965, 4294901760
    %v1869 = vsub.f32 %v965, %v1868
    %1870 = vmatpush1.msra.mxu0 %v1869
    %1871 = vmatprep.subr.mxu0 0.0
    %v1872 = vand.u32 %v966, 4294901760
    %v1873 = vsub.f32 %v966, %v1872
    %1874 = vmatpush1.msra.mxu0 %v1873
    %1875 = vmatprep.subr.mxu0 0.0
    %v1876 = vand.u32 %v967, 4294901760
    %v1877 = vsub.f32 %v967, %v1876
    %1878 = vmatpush1.msra.mxu0 %v1877
    %1879 = vmatprep.subr.mxu0 0.0
    %v1880 = vand.u32 %v968, 4294901760
    %v1881 = vsub.f32 %v968, %v1880
    %1882 = vmatpush1.msra.mxu0 %v1881
    %1883 = vmatprep.subr.mxu0 0.0
    %v1884 = vand.u32 %v969, 4294901760
    %v1885 = vsub.f32 %v969, %v1884
    %1886 = vmatpush1.msra.mxu0 %v1885
    %1887 = vmatprep.subr.mxu0 0.0
    %v1888 = vand.u32 %v970, 4294901760
    %v1889 = vsub.f32 %v970, %v1888
    %1890 = vmatpush1.msra.mxu0 %v1889
    %1891 = vmatprep.subr.mxu0 0.0
    %v1892 = vand.u32 %v971, 4294901760
    %v1893 = vsub.f32 %v971, %v1892
    %1894 = vmatpush1.msra.mxu0 %v1893
    %1895 = vmatprep.subr.mxu0 0.0
    %v1896 = vand.u32 %v972, 4294901760
    %v1897 = vsub.f32 %v972, %v1896
    %1898 = vmatpush1.msra.mxu0 %v1897
    %1899 = vmatprep.subr.mxu0 0.0
    %v1900 = vand.u32 %v973, 4294901760
    %v1901 = vsub.f32 %v973, %v1900
    %1902 = vmatpush1.msra.mxu0 %v1901
    %1903 = vmatprep.subr.mxu0 0.0
    %v1904 = vand.u32 %v974, 4294901760
    %v1905 = vsub.f32 %v974, %v1904
    %1906 = vmatpush1.msra.mxu0 %v1905
    %1907 = vmatprep.subr.mxu0 0.0
    %v1908 = vand.u32 %v975, 4294901760
    %v1909 = vsub.f32 %v975, %v1908
    %1910 = vmatpush1.msra.mxu0 %v1909
    %1911 = vmatprep.subr.mxu0 0.0
    %v1912 = vand.u32 %v976, 4294901760
    %v1913 = vsub.f32 %v976, %v1912
    %1914 = vmatpush1.msra.mxu0 %v1913
    %1915 = vmatprep.subr.mxu0 0.0
    %v1916 = vand.u32 %v977, 4294901760
    %v1917 = vsub.f32 %v977, %v1916
    %1918 = vmatpush1.msra.mxu0 %v1917
    %1919 = vmatprep.subr.mxu0 0.0
    %v1920 = vand.u32 %v978, 4294901760
    %v1921 = vsub.f32 %v978, %v1920
    %1922 = vmatpush1.msra.mxu0 %v1921
    %1923 = vmatprep.subr.mxu0 0.0
    %v1924 = vand.u32 %v979, 4294901760
    %v1925 = vsub.f32 %v979, %v1924
    %1926 = vmatpush1.msra.mxu0 %v1925
    %1927 = vmatprep.subr.mxu0 0.0
    %v1928 = vand.u32 %v980, 4294901760
    %v1929 = vsub.f32 %v980, %v1928
    %1930 = vmatpush1.msra.mxu0 %v1929
    %1931 = vmatprep.subr.mxu0 0.0
    %1932 = vmatpush1.msra.mxu0 0.0
    %1933 = vmatprep.subr.mxu0 0.0
    %1934 = vmatpush1.msra.mxu0 0.0
    %1935 = vmatprep.subr.mxu0 0.0
    %1936 = vmatpush1.msra.mxu0 0.0
    %1937 = vmatprep.subr.mxu0 0.0
    %1938 = vmatpush1.msra.mxu0 0.0
    %1939 = vmatprep.subr.mxu0 0.0
    %1940 = vmatpush1.msra.mxu0 0.0
    %1941 = vmatprep.subr.mxu0 0.0
    %1942 = vmatpush1.msra.mxu0 0.0
    %1943 = vmatprep.subr.mxu0 0.0
    %1944 = vmatpush1.msra.mxu0 0.0
    %1945 = vmatprep.subr.mxu0 0.0
    %1946 = vmatpush1.msra.mxu0 0.0
    %1947 = vmatprep.subr.mxu0 0.0
    %1948 = vmatpush1.msra.mxu0 0.0
    %1949 = vmatprep.subr.mxu0 0.0
    %1950 = vmatpush1.msra.mxu0 0.0
    %1951 = vmatprep.subr.mxu0 0.0
    %1952 = vmatpush1.msra.mxu0 0.0
    %1953 = vmatprep.subr.mxu0 0.0
    %1954 = vmatpush1.msra.mxu0 0.0
    %1955 = vmatprep.subr.mxu0 0.0
    %1956 = vmatpush1.msra.mxu0 0.0
    %1957 = vmatprep.subr.mxu0 0.0
    %1958 = vmatpush1.msra.mxu0 0.0
    %1959 = vmatprep.subr.mxu0 0.0
    %1960 = vmatpush1.msra.mxu0 0.0
    %1961 = vmatprep.subr.mxu0 0.0
    %1962 = vmatpush1.msra.mxu0 0.0
    %1963 = vmatprep.mubr.f32.mxu0 0.0
    %v1964 = vand.u32 %v1624, 4294901760
    %v1965 = vsub.f32 %v1624, %v1964
    %1966 = vmatmul.mubr.f32.gmra.mrb[0].mxu0 %v1965
    %v1967 = vpop.f32.mrb[0].mxu0
    %v1968 = vadd.f32 %v1864, %v1967
    %v1969 = vpop.f32.mrb[0].mxu0
    %1970 = vdwg.mxu0
    %1971 = vmatprep.subr.mxu0 0.0
    %v1972 = vand.u32 %v965, 4294901760
    %1973 = vmatpush1.msra.mxu0 %v1972
    %1974 = vmatprep.subr.mxu0 0.0
    %v1975 = vand.u32 %v966, 4294901760
    %1976 = vmatpush1.msra.mxu0 %v1975
    %1977 = vmatprep.subr.mxu0 0.0
    %v1978 = vand.u32 %v967, 4294901760
    %1979 = vmatpush1.msra.mxu0 %v1978
    %1980 = vmatprep.subr.mxu0 0.0
    %v1981 = vand.u32 %v968, 4294901760
    %1982 = vmatpush1.msra.mxu0 %v1981
    %1983 = vmatprep.subr.mxu0 0.0
    %v1984 = vand.u32 %v969, 4294901760
    %1985 = vmatpush1.msra.mxu0 %v1984
    %1986 = vmatprep.subr.mxu0 0.0
    %v1987 = vand.u32 %v970, 4294901760
    %1988 = vmatpush1.msra.mxu0 %v1987
    %1989 = vmatprep.subr.mxu0 0.0
    %v1990 = vand.u32 %v971, 4294901760
    %1991 = vmatpush1.msra.mxu0 %v1990
    %1992 = vmatprep.subr.mxu0 0.0
    %v1993 = vand.u32 %v972, 4294901760
    %1994 = vmatpush1.msra.mxu0 %v1993
    %1995 = vmatprep.subr.mxu0 0.0
    %v1996 = vand.u32 %v973, 4294901760
    %1997 = vmatpush1.msra.mxu0 %v1996
    %1998 = vmatprep.subr.mxu0 0.0
    %v1999 = vand.u32 %v974, 4294901760
    %2000 = vmatpush1.msra.mxu0 %v1999
    %2001 = vmatprep.subr.mxu0 0.0
    %v2002 = vand.u32 %v975, 4294901760
    %2003 = vmatpush1.msra.mxu0 %v2002
    %2004 = vmatprep.subr.mxu0 0.0
    %v2005 = vand.u32 %v976, 4294901760
    %2006 = vmatpush1.msra.mxu0 %v2005
    %2007 = vmatprep.subr.mxu0 0.0
    %v2008 = vand.u32 %v977, 4294901760
    %2009 = vmatpush1.msra.mxu0 %v2008
    %2010 = vmatprep.subr.mxu0 0.0
    %v2011 = vand.u32 %v978, 4294901760
    %2012 = vmatpush1.msra.mxu0 %v2011
    %2013 = vmatprep.subr.mxu0 0.0
    %v2014 = vand.u32 %v979, 4294901760
    %2015 = vmatpush1.msra.mxu0 %v2014
    %2016 = vmatprep.subr.mxu0 0.0
    %v2017 = vand.u32 %v980, 4294901760
    %2018 = vmatpush1.msra.mxu0 %v2017
    %2019 = vmatprep.subr.mxu0 0.0
    %2020 = vmatpush1.msra.mxu0 0.0
    %2021 = vmatprep.subr.mxu0 0.0
    %2022 = vmatpush1.msra.mxu0 0.0
    %2023 = vmatprep.subr.mxu0 0.0
    %2024 = vmatpush1.msra.mxu0 0.0
    %2025 = vmatprep.subr.mxu0 0.0
    %2026 = vmatpush1.msra.mxu0 0.0
    %2027 = vmatprep.subr.mxu0 0.0
    %2028 = vmatpush1.msra.mxu0 0.0
    %2029 = vmatprep.subr.mxu0 0.0
    %2030 = vmatpush1.msra.mxu0 0.0
    %2031 = vmatprep.subr.mxu0 0.0
    %2032 = vmatpush1.msra.mxu0 0.0
    %2033 = vmatprep.subr.mxu0 0.0
    %2034 = vmatpush1.msra.mxu0 0.0
    %2035 = vmatprep.subr.mxu0 0.0
    %2036 = vmatpush1.msra.mxu0 0.0
    %2037 = vmatprep.subr.mxu0 0.0
    %2038 = vmatpush1.msra.mxu0 0.0
    %2039 = vmatprep.subr.mxu0 0.0
    %2040 = vmatpush1.msra.mxu0 0.0
    %2041 = vmatprep.subr.mxu0 0.0
    %2042 = vmatpush1.msra.mxu0 0.0
    %2043 = vmatprep.subr.mxu0 0.0
    %2044 = vmatpush1.msra.mxu0 0.0
    %2045 = vmatprep.subr.mxu0 0.0
    %2046 = vmatpush1.msra.mxu0 0.0
    %2047 = vmatprep.subr.mxu0 0.0
    %2048 = vmatpush1.msra.mxu0 0.0
    %2049 = vmatprep.subr.mxu0 0.0
    %2050 = vmatpush1.msra.mxu0 0.0
    %2051 = vmatprep.mubr.f32.mxu0 0.0
    %v2052 = vand.u32 %v1624, 4294901760
    %v2053 = vsub.f32 %v1624, %v2052
    %v2054 = vand.u32 %v2053, 4294901760
    %2055 = vmatmul.mubr.f32.gmra.mrb[0].mxu0 %v2054
    %v2056 = vpop.f32.mrb[0].mxu0
    %v2057 = vadd.f32 %v1968, %v2056
    %v2058 = vpop.f32.mrb[0].mxu0
    %2059 = vdwg.mxu0
    %2060 = vmatprep.subr.mxu0 0.0
    %v2061 = vand.u32 %v965, 4294901760
    %v2062 = vsub.f32 %v965, %v2061
    %v2063 = vand.u32 %v2062, 4294901760
    %2064 = vmatpush1.msra.mxu0 %v2063
    %2065 = vmatprep.subr.mxu0 0.0
    %v2066 = vand.u32 %v966, 4294901760
    %v2067 = vsub.f32 %v966, %v2066
    %v2068 = vand.u32 %v2067, 4294901760
    %2069 = vmatpush1.msra.mxu0 %v2068
    %2070 = vmatprep.subr.mxu0 0.0
    %v2071 = vand.u32 %v967, 4294901760
    %v2072 = vsub.f32 %v967, %v2071
    %v2073 = vand.u32 %v2072, 4294901760
    %2074 = vmatpush1.msra.mxu0 %v2073
    %2075 = vmatprep.subr.mxu0 0.0
    %v2076 = vand.u32 %v968, 4294901760
    %v2077 = vsub.f32 %v968, %v2076
    %v2078 = vand.u32 %v2077, 4294901760
    %2079 = vmatpush1.msra.mxu0 %v2078
    %2080 = vmatprep.subr.mxu0 0.0
    %v2081 = vand.u32 %v969, 4294901760
    %v2082 = vsub.f32 %v969, %v2081
    %v2083 = vand.u32 %v2082, 4294901760
    %2084 = vmatpush1.msra.mxu0 %v2083
    %2085 = vmatprep.subr.mxu0 0.0
    %v2086 = vand.u32 %v970, 4294901760
    %v2087 = vsub.f32 %v970, %v2086
    %v2088 = vand.u32 %v2087, 4294901760
    %2089 = vmatpush1.msra.mxu0 %v2088
    %2090 = vmatprep.subr.mxu0 0.0
    %v2091 = vand.u32 %v971, 4294901760
    %v2092 = vsub.f32 %v971, %v2091
    %v2093 = vand.u32 %v2092, 4294901760
    %2094 = vmatpush1.msra.mxu0 %v2093
    %2095 = vmatprep.subr.mxu0 0.0
    %v2096 = vand.u32 %v972, 4294901760
    %v2097 = vsub.f32 %v972, %v2096
    %v2098 = vand.u32 %v2097, 4294901760
    %2099 = vmatpush1.msra.mxu0 %v2098
    %2100 = vmatprep.subr.mxu0 0.0
    %v2101 = vand.u32 %v973, 4294901760
    %v2102 = vsub.f32 %v973, %v2101
    %v2103 = vand.u32 %v2102, 4294901760
    %2104 = vmatpush1.msra.mxu0 %v2103
    %2105 = vmatprep.subr.mxu0 0.0
    %v2106 = vand.u32 %v974, 4294901760
    %v2107 = vsub.f32 %v974, %v2106
    %v2108 = vand.u32 %v2107, 4294901760
    %2109 = vmatpush1.msra.mxu0 %v2108
    %2110 = vmatprep.subr.mxu0 0.0
    %v2111 = vand.u32 %v975, 4294901760
    %v2112 = vsub.f32 %v975, %v2111
    %v2113 = vand.u32 %v2112, 4294901760
    %2114 = vmatpush1.msra.mxu0 %v2113
    %2115 = vmatprep.subr.mxu0 0.0
    %v2116 = vand.u32 %v976, 4294901760
    %v2117 = vsub.f32 %v976, %v2116
    %v2118 = vand.u32 %v2117, 4294901760
    %2119 = vmatpush1.msra.mxu0 %v2118
    %2120 = vmatprep.subr.mxu0 0.0
    %v2121 = vand.u32 %v977, 4294901760
    %v2122 = vsub.f32 %v977, %v2121
    %v2123 = vand.u32 %v2122, 4294901760
    %2124 = vmatpush1.msra.mxu0 %v2123
    %2125 = vmatprep.subr.mxu0 0.0
    %v2126 = vand.u32 %v978, 4294901760
    %v2127 = vsub.f32 %v978, %v2126
    %v2128 = vand.u32 %v2127, 4294901760
    %2129 = vmatpush1.msra.mxu0 %v2128
    %2130 = vmatprep.subr.mxu0 0.0
    %v2131 = vand.u32 %v979, 4294901760
    %v2132 = vsub.f32 %v979, %v2131
    %v2133 = vand.u32 %v2132, 4294901760
    %2134 = vmatpush1.msra.mxu0 %v2133
    %2135 = vmatprep.subr.mxu0 0.0
    %v2136 = vand.u32 %v980, 4294901760
    %v2137 = vsub.f32 %v980, %v2136
    %v2138 = vand.u32 %v2137, 4294901760
    %2139 = vmatpush1.msra.mxu0 %v2138
    %2140 = vmatprep.subr.mxu0 0.0
    %2141 = vmatpush1.msra.mxu0 0.0
    %2142 = vmatprep.subr.mxu0 0.0
    %2143 = vmatpush1.msra.mxu0 0.0
    %2144 = vmatprep.subr.mxu0 0.0
    %2145 = vmatpush1.msra.mxu0 0.0
    %2146 = vmatprep.subr.mxu0 0.0
    %2147 = vmatpush1.msra.mxu0 0.0
    %2148 = vmatprep.subr.mxu0 0.0
    %2149 = vmatpush1.msra.mxu0 0.0
    %2150 = vmatprep.subr.mxu0 0.0
    %2151 = vmatpush1.msra.mxu0 0.0
    %2152 = vmatprep.subr.mxu0 0.0
    %2153 = vmatpush1.msra.mxu0 0.0
    %2154 = vmatprep.subr.mxu0 0.0
    %2155 = vmatpush1.msra.mxu0 0.0
    %2156 = vmatprep.subr.mxu0 0.0
    %2157 = vmatpush1.msra.mxu0 0.0
    %2158 = vmatprep.subr.mxu0 0.0
    %2159 = vmatpush1.msra.mxu0 0.0
    %2160 = vmatprep.subr.mxu0 0.0
    %2161 = vmatpush1.msra.mxu0 0.0
    %2162 = vmatprep.subr.mxu0 0.0
    %2163 = vmatpush1.msra.mxu0 0.0
    %2164 = vmatprep.subr.mxu0 0.0
    %2165 = vmatpush1.msra.mxu0 0.0
    %2166 = vmatprep.subr.mxu0 0.0
    %2167 = vmatpush1.msra.mxu0 0.0
    %2168 = vmatprep.subr.mxu0 0.0
    %2169 = vmatpush1.msra.mxu0 0.0
    %2170 = vmatprep.subr.mxu0 0.0
    %2171 = vmatpush1.msra.mxu0 0.0
    %2172 = vmatprep.mubr.f32.mxu0 0.0
    %v2173 = vand.u32 %v1624, 4294901760
    %2174 = vmatmul.mubr.f32.gmra.mrb[0].mxu0 %v2173
    %v2175 = vpop.f32.mrb[0].mxu0
    %v2176 = vadd.f32 %v2057, %v2175
    %v2177 = vpop.f32.mrb[0].mxu0
    %2178 = vdwg.mxu0
    %2179 = vmatprep.subr.mxu0 0.0
    %v2180 = vand.u32 %v965, 4294901760
    %2181 = vmatpush1.msra.mxu0 %v2180
    %2182 = vmatprep.subr.mxu0 0.0
    %v2183 = vand.u32 %v966, 4294901760
    %2184 = vmatpush1.msra.mxu0 %v2183
    %2185 = vmatprep.subr.mxu0 0.0
    %v2186 = vand.u32 %v967, 4294901760
    %2187 = vmatpush1.msra.mxu0 %v2186
    %2188 = vmatprep.subr.mxu0 0.0
    %v2189 = vand.u32 %v968, 4294901760
    %2190 = vmatpush1.msra.mxu0 %v2189
    %2191 = vmatprep.subr.mxu0 0.0
    %v2192 = vand.u32 %v969, 4294901760
    %2193 = vmatpush1.msra.mxu0 %v2192
    %2194 = vmatprep.subr.mxu0 0.0
    %v2195 = vand.u32 %v970, 4294901760
    %2196 = vmatpush1.msra.mxu0 %v2195
    %2197 = vmatprep.subr.mxu0 0.0
    %v2198 = vand.u32 %v971, 4294901760
    %2199 = vmatpush1.msra.mxu0 %v2198
    %2200 = vmatprep.subr.mxu0 0.0
    %v2201 = vand.u32 %v972, 4294901760
    %2202 = vmatpush1.msra.mxu0 %v2201
    %2203 = vmatprep.subr.mxu0 0.0
    %v2204 = vand.u32 %v973, 4294901760
    %2205 = vmatpush1.msra.mxu0 %v2204
    %2206 = vmatprep.subr.mxu0 0.0
    %v2207 = vand.u32 %v974, 4294901760
    %2208 = vmatpush1.msra.mxu0 %v2207
    %2209 = vmatprep.subr.mxu0 0.0
    %v2210 = vand.u32 %v975, 4294901760
    %2211 = vmatpush1.msra.mxu0 %v2210
    %2212 = vmatprep.subr.mxu0 0.0
    %v2213 = vand.u32 %v976, 4294901760
    %2214 = vmatpush1.msra.mxu0 %v2213
    %2215 = vmatprep.subr.mxu0 0.0
    %v2216 = vand.u32 %v977, 4294901760
    %2217 = vmatpush1.msra.mxu0 %v2216
    %2218 = vmatprep.subr.mxu0 0.0
    %v2219 = vand.u32 %v978, 4294901760
    %2220 = vmatpush1.msra.mxu0 %v2219
    %2221 = vmatprep.subr.mxu0 0.0
    %v2222 = vand.u32 %v979, 4294901760
    %2223 = vmatpush1.msra.mxu0 %v2222
    %2224 = vmatprep.subr.mxu0 0.0
    %v2225 = vand.u32 %v980, 4294901760
    %2226 = vmatpush1.msra.mxu0 %v2225
    %2227 = vmatprep.subr.mxu0 0.0
    %2228 = vmatpush1.msra.mxu0 0.0
    %2229 = vmatprep.subr.mxu0 0.0
    %2230 = vmatpush1.msra.mxu0 0.0
    %2231 = vmatprep.subr.mxu0 0.0
    %2232 = vmatpush1.msra.mxu0 0.0
    %2233 = vmatprep.subr.mxu0 0.0
    %2234 = vmatpush1.msra.mxu0 0.0
    %2235 = vmatprep.subr.mxu0 0.0
    %2236 = vmatpush1.msra.mxu0 0.0
    %2237 = vmatprep.subr.mxu0 0.0
    %2238 = vmatpush1.msra.mxu0 0.0
    %2239 = vmatprep.subr.mxu0 0.0
    %2240 = vmatpush1.msra.mxu0 0.0
    %2241 = vmatprep.subr.mxu0 0.0
    %2242 = vmatpush1.msra.mxu0 0.0
    %2243 = vmatprep.subr.mxu0 0.0
    %2244 = vmatpush1.msra.mxu0 0.0
    %2245 = vmatprep.subr.mxu0 0.0
    %2246 = vmatpush1.msra.mxu0 0.0
    %2247 = vmatprep.subr.mxu0 0.0
    %2248 = vmatpush1.msra.mxu0 0.0
    %2249 = vmatprep.subr.mxu0 0.0
    %2250 = vmatpush1.msra.mxu0 0.0
    %2251 = vmatprep.subr.mxu0 0.0
    %2252 = vmatpush1.msra.mxu0 0.0
    %2253 = vmatprep.subr.mxu0 0.0
    %2254 = vmatpush1.msra.mxu0 0.0
    %2255 = vmatprep.subr.mxu0 0.0
    %2256 = vmatpush1.msra.mxu0 0.0
    %2257 = vmatprep.subr.mxu0 0.0
    %2258 = vmatpush1.msra.mxu0 0.0
    %2259 = vmatprep.mubr.f32.mxu0 0.0
    %v2260 = vand.u32 %v1624, 4294901760
    %2261 = vmatmul.mubr.f32.gmra.mrb[0].mxu0 %v2260
    %v2262 = vpop.f32.mrb[0].mxu0
    %v2263 = vadd.f32 %v2176, %v2262
    %v2264 = vpop.f32.mrb[0].mxu0
    %2265 = vdwg.mxu0
    %v2266 = vmul.f32 %v2263, 0.03125
    %v2267 = vadd.f32 %v2266, 1e-12
    %v2268 = vrsqrt.pop %v2267
    %v2269 = vmul.f32 %v1623, %v2268
    %v2270 = vlaneseq
    %v2271 = vshrl.u32 %v2270, 7
    %v2272 = vsub.s32 1, %v2271
    %v2273 = vrot.slane %v93, %v2272
    %v2274 = vmul.f32 %v2269, %v2273
    %v2275 = vlaneseq
    %v2276 = vshrl.u32 %v2275, 7
    %v2277 = vsub.s32 2, %v2276
    %v2278 = vrot.slane %v93, %v2277
    %v2279 = vadd.f32 %v2274, %v2278
    %2280 = vst [vmem:[#allocation8] sm:$0xf] %v2279
    // Predicated region
    $region34: #{tpu_custom_call.1} parent=1 // pred_check
      _
    $region35: #{tpu_custom_call.1} parent=1 // pred_check_branch
      %2282 = sbr.rel (0) target = $region37
    $region36: #{tpu_custom_call.1} parent=1 // pred_region
      %s2284 = ssub.s32 64, 64
      %2285 = vsyncadd [#allocation4], %s2284
      %s2287 = sshll.u32 [#allocation8], 4
      %s2288 = int_to_ptr.vmem [resolvable:$true] %s2287
      %2290 = dma.vmem_to_hbm [thread:$0]  %s2288, 64, %s5, [#allocation4]
    $region37: #{tpu_custom_call.1} parent=1 // pred_fallthru
      _
    // Predicated region
    $region38: #{tpu_custom_call.1} parent=1 // pred_check
      _
    $region39: #{tpu_custom_call.1} parent=1 // pred_check_branch
      %2292 = sbr.rel (0) target = $region41
    $region40: #{tpu_custom_call.1} parent=1 // pred_region
      %2293 = dma.done [#allocation4], 64
    $region41: #{tpu_custom_call.1} parent=1 // pred_fallthru
      _
    %2294 = vsyncpa [#allocation3], 1
    %2295 = vsyncpa [#allocation6], 1
    %2296 = vsyncpa [#allocation4], 1

</llo_original>
